<compile_context>
chip_gen: v5e
topology: v5e:2x2
jax: 0.10.0
libtpu: 0.0.40
codegen_flags: <defaults>
</compile_context>

<pallas_src>
import jax
import jax.numpy as jnp
from jax.experimental import pallas as pl
from jax.experimental.pallas import tpu as pltpu

INPUT_DIM = 3
HIDDEN_DIM = 8
H2 = 2 * HIDDEN_DIM                               # weight-slab rows (W rows + mean row + pad)
N_GRAPH_ITERS = 3
N_NODE_LAYERS = 4
N_GP_HIDDEN = 3
N_LAYERS = 1 + N_NODE_LAYERS + N_GP_HIDDEN + 1    # input + node + graph-pred + head = 9
LN_EPS = 1e-5                                     # PyTorch nn.LayerNorm default
TILE_N_MAX = 8192                                 # node tile (lane axis)
NUM_CORES = 2                                     # leading "parallel" grid axis (v7x megacore)
ONEHOT_VMEM_BUDGET = 12 * 1024 * 1024             # bytes for gids + one-hot + temporaries
ONEHOT_BYTES_PER_CELL = 12                        # 4 (int32 gids) + 2 (bf16 onehot) + slack


def _round_up(a, b):
    return ((a + b - 1) // b) * b


# --------------------------------------------------------------------------------------
# Shared layer: Linear -> LayerNorm -> Tanh in (features-on-sublanes, nodes-on-lanes) layout
# --------------------------------------------------------------------------------------
def _ln_tanh_layer(h, w_l, v_l):
    """w_l: (H2, K) rows 0..7 = W, row 8 = column-mean of W (mean fold).
       v_l: (3, H2, 1) = [bias(+mean row), gamma, beta].  h: (K, N) -> (H, N)."""
    z = jnp.dot(w_l, h, preferred_element_type=jnp.float32) + v_l[0]     # (H2, N)
    mu = z[HIDDEN_DIM:HIDDEN_DIM + 1, :]                                 # folded mean, (1, N)
    d = z[:HIDDEN_DIM, :] - mu                                           # (H, N)
    var = jnp.mean(d * d, axis=0, keepdims=True)                         # one sublane reduce
    hn = d * jax.lax.rsqrt(var + LN_EPS)
    # TODO(synk): optional bf16 tanh/elementwise chain on v6e/v7x if a bundle dump shows
    #             the EUP/VALU slot saturating (skipped: keeps the 1e-4 f32 tolerance).
    return jnp.tanh(hn * v_l[1, :HIDDEN_DIM] + v_l[2, :HIDDEN_DIM])


# --------------------------------------------------------------------------------------
# Kernel 1: per-node MLP stack + pooled partial sums (grid = (NUM_CORES, tiles_per_core))
# --------------------------------------------------------------------------------------
def gnn_node_kernel(x_ref, batch_ref, w_ref, v_ref, out_ref, gids_ref, acc_ref):
    inner = pl.program_id(1)

    @pl.when(inner == 0)
    def _init():
        acc_ref[...] = jnp.zeros_like(acc_ref)
        # Hoisted iota: generated once per core, reloaded (vld) on later tiles.
        gids_ref[...] = jax.lax.broadcasted_iota(jnp.int32, gids_ref.shape, 0)

    w = w_ref[...]                                # (9, 16, 8)
    v = v_ref[...]                                # (9, 3, 16, 1)

    # ---- input network: Linear(3->8) + LN + Tanh; x tile is (3, TILE_N) ----
    h = _ln_tanh_layer(x_ref[...], w[0][:, :INPUT_DIM], v[0])            # (8, TILE_N)

    # ---- message-passing iterations (node MLP + residual) ----
    for _ in range(N_GRAPH_ITERS):
        h0 = h
        for l in range(N_NODE_LAYERS):
            h = _ln_tanh_layer(h, w[1 + l], v[1 + l])
        h = h + h0

    # ---- scatter-sum into per-core accumulator via bf16 one-hot on the MXU ----
    # One-hot is exact in bf16; h is split hi+lo so the pooled sum keeps ~f32 accuracy.
    onehot = (gids_ref[...] == batch_ref[...]).astype(jnp.bfloat16)      # (G_pad, TILE_N)
    h_hi = h.astype(jnp.bfloat16)
    h_lo = (h - h_hi.astype(jnp.float32)).astype(jnp.bfloat16)
    dn = (((1,), (1,)), ((), ()))                                        # h @ onehot^T
    acc_ref[...] += (
        jax.lax.dot_general(h_hi, onehot, dn, preferred_element_type=jnp.float32)
        + jax.lax.dot_general(h_lo, onehot, dn, preferred_element_type=jnp.float32))

    @pl.when(inner == pl.num_programs(1) - 1)
    def _emit():
        out_ref[0] = acc_ref[...]                                        # per-core partial sum


# --------------------------------------------------------------------------------------
# Kernel 2: reduce the per-core partials, scatter_mean, graph-prediction head
# --------------------------------------------------------------------------------------
def graph_head_kernel(part_ref, invc_ref, w_ref, v_ref, out_ref):
    w = w_ref[...]
    v = v_ref[...]
    s = jnp.sum(part_ref[...], axis=0) * invc_ref[...]                   # (8, G_pad) mean
    for l in range(N_GP_HIDDEN):
        s = _ln_tanh_layer(s, w[1 + N_NODE_LAYERS + l], v[1 + N_NODE_LAYERS + l])
    lo = N_LAYERS - 1                                                    # final Linear(8->1)
    o = jnp.dot(w[lo], s, preferred_element_type=jnp.float32) + v[lo, 0]
    out_ref[...] = o[0:1, :]                                             # lane-dense (1, G_pad)


# --------------------------------------------------------------------------------------
# Parameter packing: 16 tiny tensors -> one (9,16,8) weight slab + one (9,3,16,1) vector slab
# --------------------------------------------------------------------------------------
def pack_params(params):
    H = HIDDEN_DIM

    def pack_linear(W_io, b, with_mean):
        Wr = jnp.asarray(W_io, jnp.float32).T                    # (out, in)
        out_f, in_f = Wr.shape
        w = jnp.zeros((H2, H), jnp.float32).at[:out_f, :in_f].set(Wr)
        bc = jnp.zeros((H2, 1), jnp.float32).at[:out_f, 0].set(jnp.reshape(b, (-1,)))
        if with_mean:                                            # LN-mean fold (row 8)
            w = w.at[H, :in_f].set(jnp.mean(Wr, axis=0))
            bc = bc.at[H, 0].set(jnp.mean(b))
        return w, bc

    def pack_vec(gamma, beta, bias_col):
        g = jnp.ones((H2, 1), jnp.float32).at[:H, 0].set(jnp.reshape(gamma, (-1,)))
        t = jnp.zeros((H2, 1), jnp.float32).at[:H, 0].set(jnp.reshape(beta, (-1,)))
        return jnp.stack([bias_col, g, t], axis=0)               # (3, 16, 1)

    ws, vs = [], []
    w0, b0 = pack_linear(params["w_in"], params["b_in"], True)
    ws.append(w0); vs.append(pack_vec(params["g_in"], params["t_in"], b0))
    for l in range(N_NODE_LAYERS):
        wl, bl = pack_linear(params["w_nd"][l], params["b_nd"][l], True)
        ws.append(wl); vs.append(pack_vec(params["g_nd"][l], params["t_nd"][l], bl))
    for l in range(N_GP_HIDDEN):
        wl, bl = pack_linear(params["w_gp"][l], params["b_gp"][l], True)
        ws.append(wl); vs.append(pack_vec(params["g_gp"][l], params["t_gp"][l], bl))
    wo, bo = pack_linear(params["w_out"], params["b_out"], False)         # head: no LN
    ws.append(wo)
    vs.append(pack_vec(jnp.ones((H,), jnp.float32), jnp.zeros((H,), jnp.float32), bo))
    return jnp.stack(ws, axis=0), jnp.stack(vs, axis=0)          # (9,16,8), (9,3,16,1)


# --------------------------------------------------------------------------------------
# Wrapper
# --------------------------------------------------------------------------------------
def gnn_graph_classifier(x, batch, params, num_graphs, tile_n_max=TILE_N_MAX):
    n_nodes = x.shape[0]
    H = HIDDEN_DIM
    g_pad = max(128, _round_up(num_graphs, 128))                 # lane-dense graph axis

    # Node tiling: as big as the VMEM budget for the (g_pad, tile_n) gids/one-hot allows
    # (keeps v7x's smaller 64 MiB VMEM safe), rounded to 128 lanes, even number of tiles.
    n_pad0 = _round_up(max(n_nodes, 128), 128)
    cap = max(128, (ONEHOT_VMEM_BUDGET // (g_pad * ONEHOT_BYTES_PER_CELL)) // 128 * 128)
    tile_n = min(tile_n_max, n_pad0, cap)
    n_pad = _round_up(n_pad0, NUM_CORES * tile_n)
    num_tiles = n_pad // tile_n
    tiles_per_core = num_tiles // NUM_CORES

    batch = batch.astype(jnp.int32)

    # Node-on-lanes layout, only the 3 real feature rows (padded node columns are zero).
    xt = jnp.zeros((INPUT_DIM, n_pad), jnp.float32).at[:, :n_nodes].set(x.T)
    # Padding nodes get sentinel graph id g_pad -> match no one-hot row -> no pollution.
    batch_row = jnp.full((1, n_pad), g_pad, jnp.int32).at[0, :n_nodes].set(batch)

    # Per-graph inverse counts for scatter_mean (O(N) scalar host work).
    counts = jax.ops.segment_sum(jnp.ones((n_nodes,), jnp.float32), batch,
                                 num_segments=num_graphs)
    inv_counts = jnp.zeros((1, g_pad), jnp.float32).at[0, :num_graphs].set(
        1.0 / jnp.maximum(counts, 1.0))

    w_slab, v_slab = pack_params(params)

    node_grid = pltpu.PrefetchScalarGridSpec(
        num_scalar_prefetch=0,
        grid=(NUM_CORES, tiles_per_core),
        in_specs=[
            pl.BlockSpec((INPUT_DIM, tile_n),
                         lambda c, i: (0, c * tiles_per_core + i)),          # x tile
            pl.BlockSpec((1, tile_n),
                         lambda c, i: (0, c * tiles_per_core + i)),          # batch tile
            pl.BlockSpec((N_LAYERS, H2, H), lambda c, i: (0, 0, 0)),         # weight slab
            pl.BlockSpec((N_LAYERS, 3, H2, 1), lambda c, i: (0, 0, 0, 0)),   # bias/gamma/beta
        ],
        out_specs=pl.BlockSpec((1, H, g_pad), lambda c, i: (c, 0, 0)),       # per-core partial
        scratch_shapes=[
            pltpu.VMEM((g_pad, tile_n), jnp.int32),      # hoisted iota for the one-hot
            pltpu.VMEM((H, g_pad), jnp.float32),         # pooled-sum accumulator
        ],
    )
    partials = pl.pallas_call(
        gnn_node_kernel,
        out_shape=jax.ShapeDtypeStruct((NUM_CORES, H, g_pad), jnp.float32),
        grid_spec=node_grid,
        compiler_params=pltpu.CompilerParams(
            dimension_semantics=("parallel", "arbitrary"),   # core split x accumulating tiles
            vmem_limit_bytes=32 * 1024 * 1024,
        ),
    )(xt, batch_row, w_slab, v_slab)

    head_grid = pltpu.PrefetchScalarGridSpec(
        num_scalar_prefetch=0,
        grid=(1,),
        in_specs=[
            pl.BlockSpec((NUM_CORES, H, g_pad), lambda i: (0, 0, 0)),
            pl.BlockSpec((1, g_pad), lambda i: (0, 0)),
            pl.BlockSpec((N_LAYERS, H2, H), lambda i: (0, 0, 0)),
            pl.BlockSpec((N_LAYERS, 3, H2, 1), lambda i: (0, 0, 0, 0)),
        ],
        out_specs=pl.BlockSpec((1, g_pad), lambda i: (0, 0)),
    )
    out = pl.pallas_call(
        graph_head_kernel,
        out_shape=jax.ShapeDtypeStruct((1, g_pad), jnp.float32),
        grid_spec=head_grid,
        compiler_params=pltpu.CompilerParams(dimension_semantics=("arbitrary",)),
    )(partials, inv_counts, w_slab, v_slab)

    return out[0, :num_graphs]                                   # .squeeze(-1)


# --------------------------------------------------------------------------------------
# Parameters + pure-JAX reference (unchanged semantics)
# --------------------------------------------------------------------------------------
def init_params(key):
    """Deterministic synthetic parameters (PyTorch-Linear-style uniform init)."""
    ks = iter(jax.random.split(key, 16))

    def lin_w(k, fan_in, shape):
        bound = 1.0 / (fan_in ** 0.5)
        return jax.random.uniform(k, shape, jnp.float32, -bound, bound)

    H, D = HIDDEN_DIM, INPUT_DIM
    params = {
        "w_in": lin_w(next(ks), D, (D, H)),
        "b_in": lin_w(next(ks), D, (1, H)),
        "g_in": jnp.ones((1, H), jnp.float32),
        "t_in": jnp.zeros((1, H), jnp.float32),
        "w_nd": lin_w(next(ks), H, (N_NODE_LAYERS, H, H)),
        "b_nd": lin_w(next(ks), H, (N_NODE_LAYERS, 1, H)),
        "g_nd": jnp.ones((N_NODE_LAYERS, 1, H), jnp.float32),
        "t_nd": jnp.zeros((N_NODE_LAYERS, 1, H), jnp.float32),
        "w_gp": lin_w(next(ks), H, (N_GP_HIDDEN, H, H)),
        "b_gp": lin_w(next(ks), H, (N_GP_HIDDEN, 1, H)),
        "g_gp": jnp.ones((N_GP_HIDDEN, 1, H), jnp.float32),
        "t_gp": jnp.zeros((N_GP_HIDDEN, 1, H), jnp.float32),
        "w_out": lin_w(next(ks), H, (H, 1)),
        "b_out": lin_w(next(ks), H, (1, 1)),
    }
    return params


def reference_forward(x, batch, params, num_graphs):
    """Pure-JAX f32 reference of the PyTorch forward pass."""
    def ln_tanh(h, g, t):
        mu = jnp.mean(h, axis=-1, keepdims=True)
        var = jnp.mean((h - mu) ** 2, axis=-1, keepdims=True)
        return jnp.tanh((h - mu) / jnp.sqrt(var + LN_EPS) * g + t)

    h = ln_tanh(x @ params["w_in"] + params["b_in"], params["g_in"], params["t_in"])
    for _ in range(N_GRAPH_ITERS):
        h0 = h
        for l in range(N_NODE_LAYERS):
            h = ln_tanh(h @ params["w_nd"][l] + params["b_nd"][l],
                        params["g_nd"][l], params["t_nd"][l])
        h = h + h0
    oh = (jnp.arange(num_graphs)[:, None] == batch[None, :]).astype(jnp.float32)
    s = (oh @ h) / jnp.maximum(jnp.sum(oh, axis=1, keepdims=True), 1.0)
    for l in range(N_GP_HIDDEN):
        s = ln_tanh(s @ params["w_gp"][l] + params["b_gp"][l],
                    params["g_gp"][l], params["t_gp"][l])
    return (s @ params["w_out"] + params["b_out"])[:, 0]


if __name__ == "__main__":
    key = jax.random.PRNGKey(0)
    k_param, k_x = jax.random.split(key)

    # Small synthetic graph batch: 16 nodes, 2 graphs (10 + 6 nodes), 3 input features.
    n_nodes, num_graphs = 16, 2
    x = jax.random.normal(k_x, (n_nodes, INPUT_DIM), jnp.float32)
    batch = jnp.concatenate([jnp.zeros((10,), jnp.int32),
                             jnp.ones((6,), jnp.int32)])

    params = init_params(k_param)

    out = gnn_graph_classifier(x, batch, params, num_graphs)
    out = jax.block_until_ready(out)

    ref = reference_forward(x, batch, params, num_graphs)
    assert out.shape == (num_graphs,)
    assert jnp.allclose(out, ref, atol=1e-4, rtol=1e-4), (out, ref)

    print("KERNEL_OK")
</pallas_src>

<mosaic_0001>
module attributes {stable_mosaic.version = 11 : i64} {
  func.func @gnn_node_kernel(%arg0: i32, %arg1: i32, %arg2: memref<3x128xf32, #tpu.memory_space<vmem>>, %arg3: memref<1x128xi32, #tpu.memory_space<vmem>>, %arg4: memref<9x16x8xf32, #tpu.memory_space<vmem>>, %arg5: memref<9x3x16x1xf32, #tpu.memory_space<vmem>>, %arg6: memref<1x8x128xf32, #tpu.memory_space<vmem>>, %arg7: memref<128x128xi32, #tpu.memory_space<vmem>>, %arg8: memref<8x128xf32, #tpu.memory_space<vmem>>) attributes {dimension_semantics = [#tpu.dimension_semantics<parallel>, #tpu.dimension_semantics<arbitrary>], iteration_bounds = array<i64: 2, 1>, scalar_prefetch = 0 : i64, scratch_operands = 2 : i64, tpu.core_type = #tpu.core_type<tc>, window_params = [{transform_indices = @transform_0, window_bounds = array<i64: 3, 128>}, {transform_indices = @transform_1, window_bounds = array<i64: 1, 128>}, {pipeline_mode = #tpu.pipeline_mode<synchronous>, transform_indices = @transform_2, window_bounds = array<i64: 9, 16, 8>}, {pipeline_mode = #tpu.pipeline_mode<synchronous>, transform_indices = @transform_3, window_bounds = array<i64: 9, 3, 16, 1>}, {transform_indices = @transform_4, window_bounds = array<i64: 1, 8, 128>}]} {
    %c0_i32 = arith.constant 0 : i32
    %0 = arith.cmpi eq, %arg1, %c0_i32 : i32
    %1 = arith.extui %0 : i1 to i32
    %c0_i32_0 = arith.constant 0 : i32
    %2 = arith.cmpi ne, %1, %c0_i32_0 : i32
    scf.if %2 {
      %cst_72 = arith.constant 0.000000e+00 : f32
      %446 = vector.broadcast %cst_72 : f32 to vector<8x128xf32>
      %c0_73 = arith.constant 0 : index
      %c0_74 = arith.constant 0 : index
      %447 = vector.load %arg8[%c0_73, %c0_74] : memref<8x128xf32, #tpu.memory_space<vmem>>, vector<8x128xf32>
      tpu.vector_store %arg8[%c0_73, %c0_74], %446 {strides = array<i32>} : memref<8x128xf32, #tpu.memory_space<vmem>>, vector<8x128xf32>,
      %448 = tpu.iota {dimensions = array<i32: 0>} : vector<128x128xi32>
      %c0_75 = arith.constant 0 : index
      %c0_76 = arith.constant 0 : index
      %449 = vector.load %arg7[%c0_75, %c0_76] : memref<128x128xi32, #tpu.memory_space<vmem>>, vector<128x128xi32>
      tpu.vector_store %arg7[%c0_75, %c0_76], %448 {strides = array<i32>} : memref<128x128xi32, #tpu.memory_space<vmem>>, vector<128x128xi32>,
    } else {
    }
    %c0 = arith.constant 0 : index
    %c0_1 = arith.constant 0 : index
    %c0_2 = arith.constant 0 : index
    %3 = vector.load %arg4[%c0, %c0_1, %c0_2] : memref<9x16x8xf32, #tpu.memory_space<vmem>>, vector<9x16x8xf32>
    %c0_3 = arith.constant 0 : index
    %c0_4 = arith.constant 0 : index
    %c0_5 = arith.constant 0 : index
    %c0_6 = arith.constant 0 : index
    %4 = vector.load %arg5[%c0_3, %c0_4, %c0_5, %c0_6] : memref<9x3x16x1xf32, #tpu.memory_space<vmem>>, vector<9x3x16x1xf32>
    %c0_7 = arith.constant 0 : index
    %c0_8 = arith.constant 0 : index
    %5 = vector.load %arg2[%c0_7, %c0_8] : memref<3x128xf32, #tpu.memory_space<vmem>>, vector<3x128xf32>
    %6 = vector.extract_strided_slice %3 {offsets = [0, 0, 0], sizes = [1, 16, 8], strides = [1, 1, 1]} : vector<9x16x8xf32> to vector<1x16x8xf32>
    %7 = vector.shape_cast %6 : vector<1x16x8xf32> to vector<16x8xf32>
    %8 = vector.extract_strided_slice %7 {offsets = [0, 0], sizes = [16, 3], strides = [1, 1]} : vector<16x8xf32> to vector<16x3xf32>
    %9 = vector.extract_strided_slice %4 {offsets = [0, 0, 0, 0], sizes = [1, 3, 16, 1], strides = [1, 1, 1, 1]} : vector<9x3x16x1xf32> to vector<1x3x16x1xf32>
    %10 = vector.shape_cast %9 : vector<1x3x16x1xf32> to vector<3x16x1xf32>
    %cst = arith.constant dense<0.000000e+00> : vector<16x128xf32>
    %11 = tpu.matmul %8, %5, %cst {dimension_numbers = #tpu.dot_dimension_numbers<[1], [0], [0], [1], [0, 0, 1, 1], [], []>} : vector<16x3xf32>, vector<3x128xf32>, vector<16x128xf32> -> vector<16x128xf32>
    %12 = vector.extract_strided_slice %10 {offsets = [0, 0, 0], sizes = [1, 16, 1], strides = [1, 1, 1]} : vector<3x16x1xf32> to vector<1x16x1xf32>
    %13 = vector.shape_cast %12 : vector<1x16x1xf32> to vector<16x1xf32>
    %14 = vector.broadcast %13 : vector<16x1xf32> to vector<16x128xf32>
    %15 = arith.addf %11, %14 : vector<16x128xf32>
    %16 = vector.extract_strided_slice %15 {offsets = [8, 0], sizes = [1, 128], strides = [1, 1]} : vector<16x128xf32> to vector<1x128xf32>
    %17 = vector.extract_strided_slice %15 {offsets = [0, 0], sizes = [8, 128], strides = [1, 1]} : vector<16x128xf32> to vector<8x128xf32>
    %18 = vector.broadcast %16 : vector<1x128xf32> to vector<8x128xf32>
    %19 = arith.subf %17, %18 : vector<8x128xf32>
    %20 = arith.mulf %19, %19 : vector<8x128xf32>
    %cst_9 = arith.constant dense<0.000000e+00> : vector<128xf32>
    %21 = vector.multi_reduction <add>, %20, %cst_9 [0] : vector<8x128xf32> to vector<128xf32>
    %22 = vector.shape_cast %21 : vector<128xf32> to vector<1x128xf32>
    %cst_10 = arith.constant 8.000000e+00 : f32
    %23 = vector.broadcast %cst_10 : f32 to vector<1x128xf32>
    %24 = arith.divf %22, %23 : vector<1x128xf32>
    %cst_11 = arith.constant 9.99999974E-6 : f32
    %25 = vector.broadcast %cst_11 : f32 to vector<1x128xf32>
    %26 = arith.addf %24, %25 : vector<1x128xf32>
    %27 = math.rsqrt %26 : vector<1x128xf32>
    %28 = vector.broadcast %27 : vector<1x128xf32> to vector<8x128xf32>
    %29 = arith.mulf %19, %28 : vector<8x128xf32>
    %30 = vector.extract_strided_slice %10 {offsets = [1, 0, 0], sizes = [1, 8, 1], strides = [1, 1, 1]} : vector<3x16x1xf32> to vector<1x8x1xf32>
    %31 = vector.shape_cast %30 : vector<1x8x1xf32> to vector<8x1xf32>
    %32 = vector.broadcast %31 : vector<8x1xf32> to vector<8x128xf32>
    %33 = arith.mulf %29, %32 : vector<8x128xf32>
    %34 = vector.extract_strided_slice %10 {offsets = [2, 0, 0], sizes = [1, 8, 1], strides = [1, 1, 1]} : vector<3x16x1xf32> to vector<1x8x1xf32>
    %35 = vector.shape_cast %34 : vector<1x8x1xf32> to vector<8x1xf32>
    %36 = vector.broadcast %35 : vector<8x1xf32> to vector<8x128xf32>
    %37 = arith.addf %33, %36 : vector<8x128xf32>
    %38 = math.tanh %37 : vector<8x128xf32>
    %39 = vector.extract_strided_slice %3 {offsets = [1, 0, 0], sizes = [1, 16, 8], strides = [1, 1, 1]} : vector<9x16x8xf32> to vector<1x16x8xf32>
    %40 = vector.shape_cast %39 : vector<1x16x8xf32> to vector<16x8xf32>
    %41 = vector.extract_strided_slice %4 {offsets = [1, 0, 0, 0], sizes = [1, 3, 16, 1], strides = [1, 1, 1, 1]} : vector<9x3x16x1xf32> to vector<1x3x16x1xf32>
    %42 = vector.shape_cast %41 : vector<1x3x16x1xf32> to vector<3x16x1xf32>
    %cst_12 = arith.constant dense<0.000000e+00> : vector<16x128xf32>
    %43 = tpu.matmul %40, %38, %cst_12 {dimension_numbers = #tpu.dot_dimension_numbers<[1], [0], [0], [1], [0, 0, 1, 1], [], []>} : vector<16x8xf32>, vector<8x128xf32>, vector<16x128xf32> -> vector<16x128xf32>
    %44 = vector.extract_strided_slice %42 {offsets = [0, 0, 0], sizes = [1, 16, 1], strides = [1, 1, 1]} : vector<3x16x1xf32> to vector<1x16x1xf32>
    %45 = vector.shape_cast %44 : vector<1x16x1xf32> to vector<16x1xf32>
    %46 = vector.broadcast %45 : vector<16x1xf32> to vector<16x128xf32>
    %47 = arith.addf %43, %46 : vector<16x128xf32>
    %48 = vector.extract_strided_slice %47 {offsets = [8, 0], sizes = [1, 128], strides = [1, 1]} : vector<16x128xf32> to vector<1x128xf32>
    %49 = vector.extract_strided_slice %47 {offsets = [0, 0], sizes = [8, 128], strides = [1, 1]} : vector<16x128xf32> to vector<8x128xf32>
    %50 = vector.broadcast %48 : vector<1x128xf32> to vector<8x128xf32>
    %51 = arith.subf %49, %50 : vector<8x128xf32>
    %52 = arith.mulf %51, %51 : vector<8x128xf32>
    %cst_13 = arith.constant dense<0.000000e+00> : vector<128xf32>
    %53 = vector.multi_reduction <add>, %52, %cst_13 [0] : vector<8x128xf32> to vector<128xf32>
    %54 = vector.shape_cast %53 : vector<128xf32> to vector<1x128xf32>
    %cst_14 = arith.constant 8.000000e+00 : f32
    %55 = vector.broadcast %cst_14 : f32 to vector<1x128xf32>
    %56 = arith.divf %54, %55 : vector<1x128xf32>
    %cst_15 = arith.constant 9.99999974E-6 : f32
    %57 = vector.broadcast %cst_15 : f32 to vector<1x128xf32>
    %58 = arith.addf %56, %57 : vector<1x128xf32>
    %59 = math.rsqrt %58 : vector<1x128xf32>
    %60 = vector.broadcast %59 : vector<1x128xf32> to vector<8x128xf32>
    %61 = arith.mulf %51, %60 : vector<8x128xf32>
    %62 = vector.extract_strided_slice %42 {offsets = [1, 0, 0], sizes = [1, 8, 1], strides = [1, 1, 1]} : vector<3x16x1xf32> to vector<1x8x1xf32>
    %63 = vector.shape_cast %62 : vector<1x8x1xf32> to vector<8x1xf32>
    %64 = vector.broadcast %63 : vector<8x1xf32> to vector<8x128xf32>
    %65 = arith.mulf %61, %64 : vector<8x128xf32>
    %66 = vector.extract_strided_slice %42 {offsets = [2, 0, 0], sizes = [1, 8, 1], strides = [1, 1, 1]} : vector<3x16x1xf32> to vector<1x8x1xf32>
    %67 = vector.shape_cast %66 : vector<1x8x1xf32> to vector<8x1xf32>
    %68 = vector.broadcast %67 : vector<8x1xf32> to vector<8x128xf32>
    %69 = arith.addf %65, %68 : vector<8x128xf32>
    %70 = math.tanh %69 : vector<8x128xf32>
    %71 = vector.extract_strided_slice %3 {offsets = [2, 0, 0], sizes = [1, 16, 8], strides = [1, 1, 1]} : vector<9x16x8xf32> to vector<1x16x8xf32>
    %72 = vector.shape_cast %71 : vector<1x16x8xf32> to vector<16x8xf32>
    %73 = vector.extract_strided_slice %4 {offsets = [2, 0, 0, 0], sizes = [1, 3, 16, 1], strides = [1, 1, 1, 1]} : vector<9x3x16x1xf32> to vector<1x3x16x1xf32>
    %74 = vector.shape_cast %73 : vector<1x3x16x1xf32> to vector<3x16x1xf32>
    %cst_16 = arith.constant dense<0.000000e+00> : vector<16x128xf32>
    %75 = tpu.matmul %72, %70, %cst_16 {dimension_numbers = #tpu.dot_dimension_numbers<[1], [0], [0], [1], [0, 0, 1, 1], [], []>} : vector<16x8xf32>, vector<8x128xf32>, vector<16x128xf32> -> vector<16x128xf32>
    %76 = vector.extract_strided_slice %74 {offsets = [0, 0, 0], sizes = [1, 16, 1], strides = [1, 1, 1]} : vector<3x16x1xf32> to vector<1x16x1xf32>
    %77 = vector.shape_cast %76 : vector<1x16x1xf32> to vector<16x1xf32>
    %78 = vector.broadcast %77 : vector<16x1xf32> to vector<16x128xf32>
    %79 = arith.addf %75, %78 : vector<16x128xf32>
    %80 = vector.extract_strided_slice %79 {offsets = [8, 0], sizes = [1, 128], strides = [1, 1]} : vector<16x128xf32> to vector<1x128xf32>
    %81 = vector.extract_strided_slice %79 {offsets = [0, 0], sizes = [8, 128], strides = [1, 1]} : vector<16x128xf32> to vector<8x128xf32>
    %82 = vector.broadcast %80 : vector<1x128xf32> to vector<8x128xf32>
    %83 = arith.subf %81, %82 : vector<8x128xf32>
    %84 = arith.mulf %83, %83 : vector<8x128xf32>
    %cst_17 = arith.constant dense<0.000000e+00> : vector<128xf32>
    %85 = vector.multi_reduction <add>, %84, %cst_17 [0] : vector<8x128xf32> to vector<128xf32>
    %86 = vector.shape_cast %85 : vector<128xf32> to vector<1x128xf32>
    %cst_18 = arith.constant 8.000000e+00 : f32
    %87 = vector.broadcast %cst_18 : f32 to vector<1x128xf32>
    %88 = arith.divf %86, %87 : vector<1x128xf32>
    %cst_19 = arith.constant 9.99999974E-6 : f32
    %89 = vector.broadcast %cst_19 : f32 to vector<1x128xf32>
    %90 = arith.addf %88, %89 : vector<1x128xf32>
    %91 = math.rsqrt %90 : vector<1x128xf32>
    %92 = vector.broadcast %91 : vector<1x128xf32> to vector<8x128xf32>
    %93 = arith.mulf %83, %92 : vector<8x128xf32>
    %94 = vector.extract_strided_slice %74 {offsets = [1, 0, 0], sizes = [1, 8, 1], strides = [1, 1, 1]} : vector<3x16x1xf32> to vector<1x8x1xf32>
    %95 = vector.shape_cast %94 : vector<1x8x1xf32> to vector<8x1xf32>
    %96 = vector.broadcast %95 : vector<8x1xf32> to vector<8x128xf32>
    %97 = arith.mulf %93, %96 : vector<8x128xf32>
    %98 = vector.extract_strided_slice %74 {offsets = [2, 0, 0], sizes = [1, 8, 1], strides = [1, 1, 1]} : vector<3x16x1xf32> to vector<1x8x1xf32>
    %99 = vector.shape_cast %98 : vector<1x8x1xf32> to vector<8x1xf32>
    %100 = vector.broadcast %99 : vector<8x1xf32> to vector<8x128xf32>
    %101 = arith.addf %97, %100 : vector<8x128xf32>
    %102 = math.tanh %101 : vector<8x128xf32>
    %103 = vector.extract_strided_slice %3 {offsets = [3, 0, 0], sizes = [1, 16, 8], strides = [1, 1, 1]} : vector<9x16x8xf32> to vector<1x16x8xf32>
    %104 = vector.shape_cast %103 : vector<1x16x8xf32> to vector<16x8xf32>
    %105 = vector.extract_strided_slice %4 {offsets = [3, 0, 0, 0], sizes = [1, 3, 16, 1], strides = [1, 1, 1, 1]} : vector<9x3x16x1xf32> to vector<1x3x16x1xf32>
    %106 = vector.shape_cast %105 : vector<1x3x16x1xf32> to vector<3x16x1xf32>
    %cst_20 = arith.constant dense<0.000000e+00> : vector<16x128xf32>
    %107 = tpu.matmul %104, %102, %cst_20 {dimension_numbers = #tpu.dot_dimension_numbers<[1], [0], [0], [1], [0, 0, 1, 1], [], []>} : vector<16x8xf32>, vector<8x128xf32>, vector<16x128xf32> -> vector<16x128xf32>
    %108 = vector.extract_strided_slice %106 {offsets = [0, 0, 0], sizes = [1, 16, 1], strides = [1, 1, 1]} : vector<3x16x1xf32> to vector<1x16x1xf32>
    %109 = vector.shape_cast %108 : vector<1x16x1xf32> to vector<16x1xf32>
    %110 = vector.broadcast %109 : vector<16x1xf32> to vector<16x128xf32>
    %111 = arith.addf %107, %110 : vector<16x128xf32>
    %112 = vector.extract_strided_slice %111 {offsets = [8, 0], sizes = [1, 128], strides = [1, 1]} : vector<16x128xf32> to vector<1x128xf32>
    %113 = vector.extract_strided_slice %111 {offsets = [0, 0], sizes = [8, 128], strides = [1, 1]} : vector<16x128xf32> to vector<8x128xf32>
    %114 = vector.broadcast %112 : vector<1x128xf32> to vector<8x128xf32>
    %115 = arith.subf %113, %114 : vector<8x128xf32>
    %116 = arith.mulf %115, %115 : vector<8x128xf32>
    %cst_21 = arith.constant dense<0.000000e+00> : vector<128xf32>
    %117 = vector.multi_reduction <add>, %116, %cst_21 [0] : vector<8x128xf32> to vector<128xf32>
    %118 = vector.shape_cast %117 : vector<128xf32> to vector<1x128xf32>
    %cst_22 = arith.constant 8.000000e+00 : f32
    %119 = vector.broadcast %cst_22 : f32 to vector<1x128xf32>
    %120 = arith.divf %118, %119 : vector<1x128xf32>
    %cst_23 = arith.constant 9.99999974E-6 : f32
    %121 = vector.broadcast %cst_23 : f32 to vector<1x128xf32>
    %122 = arith.addf %120, %121 : vector<1x128xf32>
    %123 = math.rsqrt %122 : vector<1x128xf32>
    %124 = vector.broadcast %123 : vector<1x128xf32> to vector<8x128xf32>
    %125 = arith.mulf %115, %124 : vector<8x128xf32>
    %126 = vector.extract_strided_slice %106 {offsets = [1, 0, 0], sizes = [1, 8, 1], strides = [1, 1, 1]} : vector<3x16x1xf32> to vector<1x8x1xf32>
    %127 = vector.shape_cast %126 : vector<1x8x1xf32> to vector<8x1xf32>
    %128 = vector.broadcast %127 : vector<8x1xf32> to vector<8x128xf32>
    %129 = arith.mulf %125, %128 : vector<8x128xf32>
    %130 = vector.extract_strided_slice %106 {offsets = [2, 0, 0], sizes = [1, 8, 1], strides = [1, 1, 1]} : vector<3x16x1xf32> to vector<1x8x1xf32>
    %131 = vector.shape_cast %130 : vector<1x8x1xf32> to vector<8x1xf32>
    %132 = vector.broadcast %131 : vector<8x1xf32> to vector<8x128xf32>
    %133 = arith.addf %129, %132 : vector<8x128xf32>
    %134 = math.tanh %133 : vector<8x128xf32>
    %135 = vector.extract_strided_slice %3 {offsets = [4, 0, 0], sizes = [1, 16, 8], strides = [1, 1, 1]} : vector<9x16x8xf32> to vector<1x16x8xf32>
    %136 = vector.shape_cast %135 : vector<1x16x8xf32> to vector<16x8xf32>
    %137 = vector.extract_strided_slice %4 {offsets = [4, 0, 0, 0], sizes = [1, 3, 16, 1], strides = [1, 1, 1, 1]} : vector<9x3x16x1xf32> to vector<1x3x16x1xf32>
    %138 = vector.shape_cast %137 : vector<1x3x16x1xf32> to vector<3x16x1xf32>
    %cst_24 = arith.constant dense<0.000000e+00> : vector<16x128xf32>
    %139 = tpu.matmul %136, %134, %cst_24 {dimension_numbers = #tpu.dot_dimension_numbers<[1], [0], [0], [1], [0, 0, 1, 1], [], []>} : vector<16x8xf32>, vector<8x128xf32>, vector<16x128xf32> -> vector<16x128xf32>
    %140 = vector.extract_strided_slice %138 {offsets = [0, 0, 0], sizes = [1, 16, 1], strides = [1, 1, 1]} : vector<3x16x1xf32> to vector<1x16x1xf32>
    %141 = vector.shape_cast %140 : vector<1x16x1xf32> to vector<16x1xf32>
    %142 = vector.broadcast %141 : vector<16x1xf32> to vector<16x128xf32>
    %143 = arith.addf %139, %142 : vector<16x128xf32>
    %144 = vector.extract_strided_slice %143 {offsets = [8, 0], sizes = [1, 128], strides = [1, 1]} : vector<16x128xf32> to vector<1x128xf32>
    %145 = vector.extract_strided_slice %143 {offsets = [0, 0], sizes = [8, 128], strides = [1, 1]} : vector<16x128xf32> to vector<8x128xf32>
    %146 = vector.broadcast %144 : vector<1x128xf32> to vector<8x128xf32>
    %147 = arith.subf %145, %146 : vector<8x128xf32>
    %148 = arith.mulf %147, %147 : vector<8x128xf32>
    %cst_25 = arith.constant dense<0.000000e+00> : vector<128xf32>
    %149 = vector.multi_reduction <add>, %148, %cst_25 [0] : vector<8x128xf32> to vector<128xf32>
    %150 = vector.shape_cast %149 : vector<128xf32> to vector<1x128xf32>
    %cst_26 = arith.constant 8.000000e+00 : f32
    %151 = vector.broadcast %cst_26 : f32 to vector<1x128xf32>
    %152 = arith.divf %150, %151 : vector<1x128xf32>
    %cst_27 = arith.constant 9.99999974E-6 : f32
    %153 = vector.broadcast %cst_27 : f32 to vector<1x128xf32>
    %154 = arith.addf %152, %153 : vector<1x128xf32>
    %155 = math.rsqrt %154 : vector<1x128xf32>
    %156 = vector.broadcast %155 : vector<1x128xf32> to vector<8x128xf32>
    %157 = arith.mulf %147, %156 : vector<8x128xf32>
    %158 = vector.extract_strided_slice %138 {offsets = [1, 0, 0], sizes = [1, 8, 1], strides = [1, 1, 1]} : vector<3x16x1xf32> to vector<1x8x1xf32>
    %159 = vector.shape_cast %158 : vector<1x8x1xf32> to vector<8x1xf32>
    %160 = vector.broadcast %159 : vector<8x1xf32> to vector<8x128xf32>
    %161 = arith.mulf %157, %160 : vector<8x128xf32>
    %162 = vector.extract_strided_slice %138 {offsets = [2, 0, 0], sizes = [1, 8, 1], strides = [1, 1, 1]} : vector<3x16x1xf32> to vector<1x8x1xf32>
    %163 = vector.shape_cast %162 : vector<1x8x1xf32> to vector<8x1xf32>
    %164 = vector.broadcast %163 : vector<8x1xf32> to vector<8x128xf32>
    %165 = arith.addf %161, %164 : vector<8x128xf32>
    %166 = math.tanh %165 : vector<8x128xf32>
    %167 = arith.addf %166, %38 : vector<8x128xf32>
    %168 = vector.extract_strided_slice %3 {offsets = [1, 0, 0], sizes = [1, 16, 8], strides = [1, 1, 1]} : vector<9x16x8xf32> to vector<1x16x8xf32>
    %169 = vector.shape_cast %168 : vector<1x16x8xf32> to vector<16x8xf32>
    %170 = vector.extract_strided_slice %4 {offsets = [1, 0, 0, 0], sizes = [1, 3, 16, 1], strides = [1, 1, 1, 1]} : vector<9x3x16x1xf32> to vector<1x3x16x1xf32>
    %171 = vector.shape_cast %170 : vector<1x3x16x1xf32> to vector<3x16x1xf32>
    %cst_28 = arith.constant dense<0.000000e+00> : vector<16x128xf32>
    %172 = tpu.matmul %169, %167, %cst_28 {dimension_numbers = #tpu.dot_dimension_numbers<[1], [0], [0], [1], [0, 0, 1, 1], [], []>} : vector<16x8xf32>, vector<8x128xf32>, vector<16x128xf32> -> vector<16x128xf32>
    %173 = vector.extract_strided_slice %171 {offsets = [0, 0, 0], sizes = [1, 16, 1], strides = [1, 1, 1]} : vector<3x16x1xf32> to vector<1x16x1xf32>
    %174 = vector.shape_cast %173 : vector<1x16x1xf32> to vector<16x1xf32>
    %175 = vector.broadcast %174 : vector<16x1xf32> to vector<16x128xf32>
    %176 = arith.addf %172, %175 : vector<16x128xf32>
    %177 = vector.extract_strided_slice %176 {offsets = [8, 0], sizes = [1, 128], strides = [1, 1]} : vector<16x128xf32> to vector<1x128xf32>
    %178 = vector.extract_strided_slice %176 {offsets = [0, 0], sizes = [8, 128], strides = [1, 1]} : vector<16x128xf32> to vector<8x128xf32>
    %179 = vector.broadcast %177 : vector<1x128xf32> to vector<8x128xf32>
    %180 = arith.subf %178, %179 : vector<8x128xf32>
    %181 = arith.mulf %180, %180 : vector<8x128xf32>
    %cst_29 = arith.constant dense<0.000000e+00> : vector<128xf32>
    %182 = vector.multi_reduction <add>, %181, %cst_29 [0] : vector<8x128xf32> to vector<128xf32>
    %183 = vector.shape_cast %182 : vector<128xf32> to vector<1x128xf32>
    %cst_30 = arith.constant 8.000000e+00 : f32
    %184 = vector.broadcast %cst_30 : f32 to vector<1x128xf32>
    %185 = arith.divf %183, %184 : vector<1x128xf32>
    %cst_31 = arith.constant 9.99999974E-6 : f32
    %186 = vector.broadcast %cst_31 : f32 to vector<1x128xf32>
    %187 = arith.addf %185, %186 : vector<1x128xf32>
    %188 = math.rsqrt %187 : vector<1x128xf32>
    %189 = vector.broadcast %188 : vector<1x128xf32> to vector<8x128xf32>
    %190 = arith.mulf %180, %189 : vector<8x128xf32>
    %191 = vector.extract_strided_slice %171 {offsets = [1, 0, 0], sizes = [1, 8, 1], strides = [1, 1, 1]} : vector<3x16x1xf32> to vector<1x8x1xf32>
    %192 = vector.shape_cast %191 : vector<1x8x1xf32> to vector<8x1xf32>
    %193 = vector.broadcast %192 : vector<8x1xf32> to vector<8x128xf32>
    %194 = arith.mulf %190, %193 : vector<8x128xf32>
    %195 = vector.extract_strided_slice %171 {offsets = [2, 0, 0], sizes = [1, 8, 1], strides = [1, 1, 1]} : vector<3x16x1xf32> to vector<1x8x1xf32>
    %196 = vector.shape_cast %195 : vector<1x8x1xf32> to vector<8x1xf32>
    %197 = vector.broadcast %196 : vector<8x1xf32> to vector<8x128xf32>
    %198 = arith.addf %194, %197 : vector<8x128xf32>
    %199 = math.tanh %198 : vector<8x128xf32>
    %200 = vector.extract_strided_slice %3 {offsets = [2, 0, 0], sizes = [1, 16, 8], strides = [1, 1, 1]} : vector<9x16x8xf32> to vector<1x16x8xf32>
    %201 = vector.shape_cast %200 : vector<1x16x8xf32> to vector<16x8xf32>
    %202 = vector.extract_strided_slice %4 {offsets = [2, 0, 0, 0], sizes = [1, 3, 16, 1], strides = [1, 1, 1, 1]} : vector<9x3x16x1xf32> to vector<1x3x16x1xf32>
    %203 = vector.shape_cast %202 : vector<1x3x16x1xf32> to vector<3x16x1xf32>
    %cst_32 = arith.constant dense<0.000000e+00> : vector<16x128xf32>
    %204 = tpu.matmul %201, %199, %cst_32 {dimension_numbers = #tpu.dot_dimension_numbers<[1], [0], [0], [1], [0, 0, 1, 1], [], []>} : vector<16x8xf32>, vector<8x128xf32>, vector<16x128xf32> -> vector<16x128xf32>
    %205 = vector.extract_strided_slice %203 {offsets = [0, 0, 0], sizes = [1, 16, 1], strides = [1, 1, 1]} : vector<3x16x1xf32> to vector<1x16x1xf32>
    %206 = vector.shape_cast %205 : vector<1x16x1xf32> to vector<16x1xf32>
    %207 = vector.broadcast %206 : vector<16x1xf32> to vector<16x128xf32>
    %208 = arith.addf %204, %207 : vector<16x128xf32>
    %209 = vector.extract_strided_slice %208 {offsets = [8, 0], sizes = [1, 128], strides = [1, 1]} : vector<16x128xf32> to vector<1x128xf32>
    %210 = vector.extract_strided_slice %208 {offsets = [0, 0], sizes = [8, 128], strides = [1, 1]} : vector<16x128xf32> to vector<8x128xf32>
    %211 = vector.broadcast %209 : vector<1x128xf32> to vector<8x128xf32>
    %212 = arith.subf %210, %211 : vector<8x128xf32>
    %213 = arith.mulf %212, %212 : vector<8x128xf32>
    %cst_33 = arith.constant dense<0.000000e+00> : vector<128xf32>
    %214 = vector.multi_reduction <add>, %213, %cst_33 [0] : vector<8x128xf32> to vector<128xf32>
    %215 = vector.shape_cast %214 : vector<128xf32> to vector<1x128xf32>
    %cst_34 = arith.constant 8.000000e+00 : f32
    %216 = vector.broadcast %cst_34 : f32 to vector<1x128xf32>
    %217 = arith.divf %215, %216 : vector<1x128xf32>
    %cst_35 = arith.constant 9.99999974E-6 : f32
    %218 = vector.broadcast %cst_35 : f32 to vector<1x128xf32>
    %219 = arith.addf %217, %218 : vector<1x128xf32>
    %220 = math.rsqrt %219 : vector<1x128xf32>
    %221 = vector.broadcast %220 : vector<1x128xf32> to vector<8x128xf32>
    %222 = arith.mulf %212, %221 : vector<8x128xf32>
    %223 = vector.extract_strided_slice %203 {offsets = [1, 0, 0], sizes = [1, 8, 1], strides = [1, 1, 1]} : vector<3x16x1xf32> to vector<1x8x1xf32>
    %224 = vector.shape_cast %223 : vector<1x8x1xf32> to vector<8x1xf32>
    %225 = vector.broadcast %224 : vector<8x1xf32> to vector<8x128xf32>
    %226 = arith.mulf %222, %225 : vector<8x128xf32>
    %227 = vector.extract_strided_slice %203 {offsets = [2, 0, 0], sizes = [1, 8, 1], strides = [1, 1, 1]} : vector<3x16x1xf32> to vector<1x8x1xf32>
    %228 = vector.shape_cast %227 : vector<1x8x1xf32> to vector<8x1xf32>
    %229 = vector.broadcast %228 : vector<8x1xf32> to vector<8x128xf32>
    %230 = arith.addf %226, %229 : vector<8x128xf32>
    %231 = math.tanh %230 : vector<8x128xf32>
    %232 = vector.extract_strided_slice %3 {offsets = [3, 0, 0], sizes = [1, 16, 8], strides = [1, 1, 1]} : vector<9x16x8xf32> to vector<1x16x8xf32>
    %233 = vector.shape_cast %232 : vector<1x16x8xf32> to vector<16x8xf32>
    %234 = vector.extract_strided_slice %4 {offsets = [3, 0, 0, 0], sizes = [1, 3, 16, 1], strides = [1, 1, 1, 1]} : vector<9x3x16x1xf32> to vector<1x3x16x1xf32>
    %235 = vector.shape_cast %234 : vector<1x3x16x1xf32> to vector<3x16x1xf32>
    %cst_36 = arith.constant dense<0.000000e+00> : vector<16x128xf32>
    %236 = tpu.matmul %233, %231, %cst_36 {dimension_numbers = #tpu.dot_dimension_numbers<[1], [0], [0], [1], [0, 0, 1, 1], [], []>} : vector<16x8xf32>, vector<8x128xf32>, vector<16x128xf32> -> vector<16x128xf32>
    %237 = vector.extract_strided_slice %235 {offsets = [0, 0, 0], sizes = [1, 16, 1], strides = [1, 1, 1]} : vector<3x16x1xf32> to vector<1x16x1xf32>
    %238 = vector.shape_cast %237 : vector<1x16x1xf32> to vector<16x1xf32>
    %239 = vector.broadcast %238 : vector<16x1xf32> to vector<16x128xf32>
    %240 = arith.addf %236, %239 : vector<16x128xf32>
    %241 = vector.extract_strided_slice %240 {offsets = [8, 0], sizes = [1, 128], strides = [1, 1]} : vector<16x128xf32> to vector<1x128xf32>
    %242 = vector.extract_strided_slice %240 {offsets = [0, 0], sizes = [8, 128], strides = [1, 1]} : vector<16x128xf32> to vector<8x128xf32>
    %243 = vector.broadcast %241 : vector<1x128xf32> to vector<8x128xf32>
    %244 = arith.subf %242, %243 : vector<8x128xf32>
    %245 = arith.mulf %244, %244 : vector<8x128xf32>
    %cst_37 = arith.constant dense<0.000000e+00> : vector<128xf32>
    %246 = vector.multi_reduction <add>, %245, %cst_37 [0] : vector<8x128xf32> to vector<128xf32>
    %247 = vector.shape_cast %246 : vector<128xf32> to vector<1x128xf32>
    %cst_38 = arith.constant 8.000000e+00 : f32
    %248 = vector.broadcast %cst_38 : f32 to vector<1x128xf32>
    %249 = arith.divf %247, %248 : vector<1x128xf32>
    %cst_39 = arith.constant 9.99999974E-6 : f32
    %250 = vector.broadcast %cst_39 : f32 to vector<1x128xf32>
    %251 = arith.addf %249, %250 : vector<1x128xf32>
    %252 = math.rsqrt %251 : vector<1x128xf32>
    %253 = vector.broadcast %252 : vector<1x128xf32> to vector<8x128xf32>
    %254 = arith.mulf %244, %253 : vector<8x128xf32>
    %255 = vector.extract_strided_slice %235 {offsets = [1, 0, 0], sizes = [1, 8, 1], strides = [1, 1, 1]} : vector<3x16x1xf32> to vector<1x8x1xf32>
    %256 = vector.shape_cast %255 : vector<1x8x1xf32> to vector<8x1xf32>
    %257 = vector.broadcast %256 : vector<8x1xf32> to vector<8x128xf32>
    %258 = arith.mulf %254, %257 : vector<8x128xf32>
    %259 = vector.extract_strided_slice %235 {offsets = [2, 0, 0], sizes = [1, 8, 1], strides = [1, 1, 1]} : vector<3x16x1xf32> to vector<1x8x1xf32>
    %260 = vector.shape_cast %259 : vector<1x8x1xf32> to vector<8x1xf32>
    %261 = vector.broadcast %260 : vector<8x1xf32> to vector<8x128xf32>
    %262 = arith.addf %258, %261 : vector<8x128xf32>
    %263 = math.tanh %262 : vector<8x128xf32>
    %264 = vector.extract_strided_slice %3 {offsets = [4, 0, 0], sizes = [1, 16, 8], strides = [1, 1, 1]} : vector<9x16x8xf32> to vector<1x16x8xf32>
    %265 = vector.shape_cast %264 : vector<1x16x8xf32> to vector<16x8xf32>
    %266 = vector.extract_strided_slice %4 {offsets = [4, 0, 0, 0], sizes = [1, 3, 16, 1], strides = [1, 1, 1, 1]} : vector<9x3x16x1xf32> to vector<1x3x16x1xf32>
    %267 = vector.shape_cast %266 : vector<1x3x16x1xf32> to vector<3x16x1xf32>
    %cst_40 = arith.constant dense<0.000000e+00> : vector<16x128xf32>
    %268 = tpu.matmul %265, %263, %cst_40 {dimension_numbers = #tpu.dot_dimension_numbers<[1], [0], [0], [1], [0, 0, 1, 1], [], []>} : vector<16x8xf32>, vector<8x128xf32>, vector<16x128xf32> -> vector<16x128xf32>
    %269 = vector.extract_strided_slice %267 {offsets = [0, 0, 0], sizes = [1, 16, 1], strides = [1, 1, 1]} : vector<3x16x1xf32> to vector<1x16x1xf32>
    %270 = vector.shape_cast %269 : vector<1x16x1xf32> to vector<16x1xf32>
    %271 = vector.broadcast %270 : vector<16x1xf32> to vector<16x128xf32>
    %272 = arith.addf %268, %271 : vector<16x128xf32>
    %273 = vector.extract_strided_slice %272 {offsets = [8, 0], sizes = [1, 128], strides = [1, 1]} : vector<16x128xf32> to vector<1x128xf32>
    %274 = vector.extract_strided_slice %272 {offsets = [0, 0], sizes = [8, 128], strides = [1, 1]} : vector<16x128xf32> to vector<8x128xf32>
    %275 = vector.broadcast %273 : vector<1x128xf32> to vector<8x128xf32>
    %276 = arith.subf %274, %275 : vector<8x128xf32>
    %277 = arith.mulf %276, %276 : vector<8x128xf32>
    %cst_41 = arith.constant dense<0.000000e+00> : vector<128xf32>
    %278 = vector.multi_reduction <add>, %277, %cst_41 [0] : vector<8x128xf32> to vector<128xf32>
    %279 = vector.shape_cast %278 : vector<128xf32> to vector<1x128xf32>
    %cst_42 = arith.constant 8.000000e+00 : f32
    %280 = vector.broadcast %cst_42 : f32 to vector<1x128xf32>
    %281 = arith.divf %279, %280 : vector<1x128xf32>
    %cst_43 = arith.constant 9.99999974E-6 : f32
    %282 = vector.broadcast %cst_43 : f32 to vector<1x128xf32>
    %283 = arith.addf %281, %282 : vector<1x128xf32>
    %284 = math.rsqrt %283 : vector<1x128xf32>
    %285 = vector.broadcast %284 : vector<1x128xf32> to vector<8x128xf32>
    %286 = arith.mulf %276, %285 : vector<8x128xf32>
    %287 = vector.extract_strided_slice %267 {offsets = [1, 0, 0], sizes = [1, 8, 1], strides = [1, 1, 1]} : vector<3x16x1xf32> to vector<1x8x1xf32>
    %288 = vector.shape_cast %287 : vector<1x8x1xf32> to vector<8x1xf32>
    %289 = vector.broadcast %288 : vector<8x1xf32> to vector<8x128xf32>
    %290 = arith.mulf %286, %289 : vector<8x128xf32>
    %291 = vector.extract_strided_slice %267 {offsets = [2, 0, 0], sizes = [1, 8, 1], strides = [1, 1, 1]} : vector<3x16x1xf32> to vector<1x8x1xf32>
    %292 = vector.shape_cast %291 : vector<1x8x1xf32> to vector<8x1xf32>
    %293 = vector.broadcast %292 : vector<8x1xf32> to vector<8x128xf32>
    %294 = arith.addf %290, %293 : vector<8x128xf32>
    %295 = math.tanh %294 : vector<8x128xf32>
    %296 = arith.addf %295, %167 : vector<8x128xf32>
    %297 = vector.extract_strided_slice %3 {offsets = [1, 0, 0], sizes = [1, 16, 8], strides = [1, 1, 1]} : vector<9x16x8xf32> to vector<1x16x8xf32>
    %298 = vector.shape_cast %297 : vector<1x16x8xf32> to vector<16x8xf32>
    %299 = vector.extract_strided_slice %4 {offsets = [1, 0, 0, 0], sizes = [1, 3, 16, 1], strides = [1, 1, 1, 1]} : vector<9x3x16x1xf32> to vector<1x3x16x1xf32>
    %300 = vector.shape_cast %299 : vector<1x3x16x1xf32> to vector<3x16x1xf32>
    %cst_44 = arith.constant dense<0.000000e+00> : vector<16x128xf32>
    %301 = tpu.matmul %298, %296, %cst_44 {dimension_numbers = #tpu.dot_dimension_numbers<[1], [0], [0], [1], [0, 0, 1, 1], [], []>} : vector<16x8xf32>, vector<8x128xf32>, vector<16x128xf32> -> vector<16x128xf32>
    %302 = vector.extract_strided_slice %300 {offsets = [0, 0, 0], sizes = [1, 16, 1], strides = [1, 1, 1]} : vector<3x16x1xf32> to vector<1x16x1xf32>
    %303 = vector.shape_cast %302 : vector<1x16x1xf32> to vector<16x1xf32>
    %304 = vector.broadcast %303 : vector<16x1xf32> to vector<16x128xf32>
    %305 = arith.addf %301, %304 : vector<16x128xf32>
    %306 = vector.extract_strided_slice %305 {offsets = [8, 0], sizes = [1, 128], strides = [1, 1]} : vector<16x128xf32> to vector<1x128xf32>
    %307 = vector.extract_strided_slice %305 {offsets = [0, 0], sizes = [8, 128], strides = [1, 1]} : vector<16x128xf32> to vector<8x128xf32>
    %308 = vector.broadcast %306 : vector<1x128xf32> to vector<8x128xf32>
    %309 = arith.subf %307, %308 : vector<8x128xf32>
    %310 = arith.mulf %309, %309 : vector<8x128xf32>
    %cst_45 = arith.constant dense<0.000000e+00> : vector<128xf32>
    %311 = vector.multi_reduction <add>, %310, %cst_45 [0] : vector<8x128xf32> to vector<128xf32>
    %312 = vector.shape_cast %311 : vector<128xf32> to vector<1x128xf32>
    %cst_46 = arith.constant 8.000000e+00 : f32
    %313 = vector.broadcast %cst_46 : f32 to vector<1x128xf32>
    %314 = arith.divf %312, %313 : vector<1x128xf32>
    %cst_47 = arith.constant 9.99999974E-6 : f32
    %315 = vector.broadcast %cst_47 : f32 to vector<1x128xf32>
    %316 = arith.addf %314, %315 : vector<1x128xf32>
    %317 = math.rsqrt %316 : vector<1x128xf32>
    %318 = vector.broadcast %317 : vector<1x128xf32> to vector<8x128xf32>
    %319 = arith.mulf %309, %318 : vector<8x128xf32>
    %320 = vector.extract_strided_slice %300 {offsets = [1, 0, 0], sizes = [1, 8, 1], strides = [1, 1, 1]} : vector<3x16x1xf32> to vector<1x8x1xf32>
    %321 = vector.shape_cast %320 : vector<1x8x1xf32> to vector<8x1xf32>
    %322 = vector.broadcast %321 : vector<8x1xf32> to vector<8x128xf32>
    %323 = arith.mulf %319, %322 : vector<8x128xf32>
    %324 = vector.extract_strided_slice %300 {offsets = [2, 0, 0], sizes = [1, 8, 1], strides = [1, 1, 1]} : vector<3x16x1xf32> to vector<1x8x1xf32>
    %325 = vector.shape_cast %324 : vector<1x8x1xf32> to vector<8x1xf32>
    %326 = vector.broadcast %325 : vector<8x1xf32> to vector<8x128xf32>
    %327 = arith.addf %323, %326 : vector<8x128xf32>
    %328 = math.tanh %327 : vector<8x128xf32>
    %329 = vector.extract_strided_slice %3 {offsets = [2, 0, 0], sizes = [1, 16, 8], strides = [1, 1, 1]} : vector<9x16x8xf32> to vector<1x16x8xf32>
    %330 = vector.shape_cast %329 : vector<1x16x8xf32> to vector<16x8xf32>
    %331 = vector.extract_strided_slice %4 {offsets = [2, 0, 0, 0], sizes = [1, 3, 16, 1], strides = [1, 1, 1, 1]} : vector<9x3x16x1xf32> to vector<1x3x16x1xf32>
    %332 = vector.shape_cast %331 : vector<1x3x16x1xf32> to vector<3x16x1xf32>
    %cst_48 = arith.constant dense<0.000000e+00> : vector<16x128xf32>
    %333 = tpu.matmul %330, %328, %cst_48 {dimension_numbers = #tpu.dot_dimension_numbers<[1], [0], [0], [1], [0, 0, 1, 1], [], []>} : vector<16x8xf32>, vector<8x128xf32>, vector<16x128xf32> -> vector<16x128xf32>
    %334 = vector.extract_strided_slice %332 {offsets = [0, 0, 0], sizes = [1, 16, 1], strides = [1, 1, 1]} : vector<3x16x1xf32> to vector<1x16x1xf32>
    %335 = vector.shape_cast %334 : vector<1x16x1xf32> to vector<16x1xf32>
    %336 = vector.broadcast %335 : vector<16x1xf32> to vector<16x128xf32>
    %337 = arith.addf %333, %336 : vector<16x128xf32>
    %338 = vector.extract_strided_slice %337 {offsets = [8, 0], sizes = [1, 128], strides = [1, 1]} : vector<16x128xf32> to vector<1x128xf32>
    %339 = vector.extract_strided_slice %337 {offsets = [0, 0], sizes = [8, 128], strides = [1, 1]} : vector<16x128xf32> to vector<8x128xf32>
    %340 = vector.broadcast %338 : vector<1x128xf32> to vector<8x128xf32>
    %341 = arith.subf %339, %340 : vector<8x128xf32>
    %342 = arith.mulf %341, %341 : vector<8x128xf32>
    %cst_49 = arith.constant dense<0.000000e+00> : vector<128xf32>
    %343 = vector.multi_reduction <add>, %342, %cst_49 [0] : vector<8x128xf32> to vector<128xf32>
    %344 = vector.shape_cast %343 : vector<128xf32> to vector<1x128xf32>
    %cst_50 = arith.constant 8.000000e+00 : f32
    %345 = vector.broadcast %cst_50 : f32 to vector<1x128xf32>
    %346 = arith.divf %344, %345 : vector<1x128xf32>
    %cst_51 = arith.constant 9.99999974E-6 : f32
    %347 = vector.broadcast %cst_51 : f32 to vector<1x128xf32>
    %348 = arith.addf %346, %347 : vector<1x128xf32>
    %349 = math.rsqrt %348 : vector<1x128xf32>
    %350 = vector.broadcast %349 : vector<1x128xf32> to vector<8x128xf32>
    %351 = arith.mulf %341, %350 : vector<8x128xf32>
    %352 = vector.extract_strided_slice %332 {offsets = [1, 0, 0], sizes = [1, 8, 1], strides = [1, 1, 1]} : vector<3x16x1xf32> to vector<1x8x1xf32>
    %353 = vector.shape_cast %352 : vector<1x8x1xf32> to vector<8x1xf32>
    %354 = vector.broadcast %353 : vector<8x1xf32> to vector<8x128xf32>
    %355 = arith.mulf %351, %354 : vector<8x128xf32>
    %356 = vector.extract_strided_slice %332 {offsets = [2, 0, 0], sizes = [1, 8, 1], strides = [1, 1, 1]} : vector<3x16x1xf32> to vector<1x8x1xf32>
    %357 = vector.shape_cast %356 : vector<1x8x1xf32> to vector<8x1xf32>
    %358 = vector.broadcast %357 : vector<8x1xf32> to vector<8x128xf32>
    %359 = arith.addf %355, %358 : vector<8x128xf32>
    %360 = math.tanh %359 : vector<8x128xf32>
    %361 = vector.extract_strided_slice %3 {offsets = [3, 0, 0], sizes = [1, 16, 8], strides = [1, 1, 1]} : vector<9x16x8xf32> to vector<1x16x8xf32>
    %362 = vector.shape_cast %361 : vector<1x16x8xf32> to vector<16x8xf32>
    %363 = vector.extract_strided_slice %4 {offsets = [3, 0, 0, 0], sizes = [1, 3, 16, 1], strides = [1, 1, 1, 1]} : vector<9x3x16x1xf32> to vector<1x3x16x1xf32>
    %364 = vector.shape_cast %363 : vector<1x3x16x1xf32> to vector<3x16x1xf32>
    %cst_52 = arith.constant dense<0.000000e+00> : vector<16x128xf32>
    %365 = tpu.matmul %362, %360, %cst_52 {dimension_numbers = #tpu.dot_dimension_numbers<[1], [0], [0], [1], [0, 0, 1, 1], [], []>} : vector<16x8xf32>, vector<8x128xf32>, vector<16x128xf32> -> vector<16x128xf32>
    %366 = vector.extract_strided_slice %364 {offsets = [0, 0, 0], sizes = [1, 16, 1], strides = [1, 1, 1]} : vector<3x16x1xf32> to vector<1x16x1xf32>
    %367 = vector.shape_cast %366 : vector<1x16x1xf32> to vector<16x1xf32>
    %368 = vector.broadcast %367 : vector<16x1xf32> to vector<16x128xf32>
    %369 = arith.addf %365, %368 : vector<16x128xf32>
    %370 = vector.extract_strided_slice %369 {offsets = [8, 0], sizes = [1, 128], strides = [1, 1]} : vector<16x128xf32> to vector<1x128xf32>
    %371 = vector.extract_strided_slice %369 {offsets = [0, 0], sizes = [8, 128], strides = [1, 1]} : vector<16x128xf32> to vector<8x128xf32>
    %372 = vector.broadcast %370 : vector<1x128xf32> to vector<8x128xf32>
    %373 = arith.subf %371, %372 : vector<8x128xf32>
    %374 = arith.mulf %373, %373 : vector<8x128xf32>
    %cst_53 = arith.constant dense<0.000000e+00> : vector<128xf32>
    %375 = vector.multi_reduction <add>, %374, %cst_53 [0] : vector<8x128xf32> to vector<128xf32>
    %376 = vector.shape_cast %375 : vector<128xf32> to vector<1x128xf32>
    %cst_54 = arith.constant 8.000000e+00 : f32
    %377 = vector.broadcast %cst_54 : f32 to vector<1x128xf32>
    %378 = arith.divf %376, %377 : vector<1x128xf32>
    %cst_55 = arith.constant 9.99999974E-6 : f32
    %379 = vector.broadcast %cst_55 : f32 to vector<1x128xf32>
    %380 = arith.addf %378, %379 : vector<1x128xf32>
    %381 = math.rsqrt %380 : vector<1x128xf32>
    %382 = vector.broadcast %381 : vector<1x128xf32> to vector<8x128xf32>
    %383 = arith.mulf %373, %382 : vector<8x128xf32>
    %384 = vector.extract_strided_slice %364 {offsets = [1, 0, 0], sizes = [1, 8, 1], strides = [1, 1, 1]} : vector<3x16x1xf32> to vector<1x8x1xf32>
    %385 = vector.shape_cast %384 : vector<1x8x1xf32> to vector<8x1xf32>
    %386 = vector.broadcast %385 : vector<8x1xf32> to vector<8x128xf32>
    %387 = arith.mulf %383, %386 : vector<8x128xf32>
    %388 = vector.extract_strided_slice %364 {offsets = [2, 0, 0], sizes = [1, 8, 1], strides = [1, 1, 1]} : vector<3x16x1xf32> to vector<1x8x1xf32>
    %389 = vector.shape_cast %388 : vector<1x8x1xf32> to vector<8x1xf32>
    %390 = vector.broadcast %389 : vector<8x1xf32> to vector<8x128xf32>
    %391 = arith.addf %387, %390 : vector<8x128xf32>
    %392 = math.tanh %391 : vector<8x128xf32>
    %393 = vector.extract_strided_slice %3 {offsets = [4, 0, 0], sizes = [1, 16, 8], strides = [1, 1, 1]} : vector<9x16x8xf32> to vector<1x16x8xf32>
    %394 = vector.shape_cast %393 : vector<1x16x8xf32> to vector<16x8xf32>
    %395 = vector.extract_strided_slice %4 {offsets = [4, 0, 0, 0], sizes = [1, 3, 16, 1], strides = [1, 1, 1, 1]} : vector<9x3x16x1xf32> to vector<1x3x16x1xf32>
    %396 = vector.shape_cast %395 : vector<1x3x16x1xf32> to vector<3x16x1xf32>
    %cst_56 = arith.constant dense<0.000000e+00> : vector<16x128xf32>
    %397 = tpu.matmul %394, %392, %cst_56 {dimension_numbers = #tpu.dot_dimension_numbers<[1], [0], [0], [1], [0, 0, 1, 1], [], []>} : vector<16x8xf32>, vector<8x128xf32>, vector<16x128xf32> -> vector<16x128xf32>
    %398 = vector.extract_strided_slice %396 {offsets = [0, 0, 0], sizes = [1, 16, 1], strides = [1, 1, 1]} : vector<3x16x1xf32> to vector<1x16x1xf32>
    %399 = vector.shape_cast %398 : vector<1x16x1xf32> to vector<16x1xf32>
    %400 = vector.broadcast %399 : vector<16x1xf32> to vector<16x128xf32>
    %401 = arith.addf %397, %400 : vector<16x128xf32>
    %402 = vector.extract_strided_slice %401 {offsets = [8, 0], sizes = [1, 128], strides = [1, 1]} : vector<16x128xf32> to vector<1x128xf32>
    %403 = vector.extract_strided_slice %401 {offsets = [0, 0], sizes = [8, 128], strides = [1, 1]} : vector<16x128xf32> to vector<8x128xf32>
    %404 = vector.broadcast %402 : vector<1x128xf32> to vector<8x128xf32>
    %405 = arith.subf %403, %404 : vector<8x128xf32>
    %406 = arith.mulf %405, %405 : vector<8x128xf32>
    %cst_57 = arith.constant dense<0.000000e+00> : vector<128xf32>
    %407 = vector.multi_reduction <add>, %406, %cst_57 [0] : vector<8x128xf32> to vector<128xf32>
    %408 = vector.shape_cast %407 : vector<128xf32> to vector<1x128xf32>
    %cst_58 = arith.constant 8.000000e+00 : f32
    %409 = vector.broadcast %cst_58 : f32 to vector<1x128xf32>
    %410 = arith.divf %408, %409 : vector<1x128xf32>
    %cst_59 = arith.constant 9.99999974E-6 : f32
    %411 = vector.broadcast %cst_59 : f32 to vector<1x128xf32>
    %412 = arith.addf %410, %411 : vector<1x128xf32>
    %413 = math.rsqrt %412 : vector<1x128xf32>
    %414 = vector.broadcast %413 : vector<1x128xf32> to vector<8x128xf32>
    %415 = arith.mulf %405, %414 : vector<8x128xf32>
    %416 = vector.extract_strided_slice %396 {offsets = [1, 0, 0], sizes = [1, 8, 1], strides = [1, 1, 1]} : vector<3x16x1xf32> to vector<1x8x1xf32>
    %417 = vector.shape_cast %416 : vector<1x8x1xf32> to vector<8x1xf32>
    %418 = vector.broadcast %417 : vector<8x1xf32> to vector<8x128xf32>
    %419 = arith.mulf %415, %418 : vector<8x128xf32>
    %420 = vector.extract_strided_slice %396 {offsets = [2, 0, 0], sizes = [1, 8, 1], strides = [1, 1, 1]} : vector<3x16x1xf32> to vector<1x8x1xf32>
    %421 = vector.shape_cast %420 : vector<1x8x1xf32> to vector<8x1xf32>
    %422 = vector.broadcast %421 : vector<8x1xf32> to vector<8x128xf32>
    %423 = arith.addf %419, %422 : vector<8x128xf32>
    %424 = math.tanh %423 : vector<8x128xf32>
    %425 = arith.addf %424, %296 : vector<8x128xf32>
    %c0_60 = arith.constant 0 : index
    %c0_61 = arith.constant 0 : index
    %426 = vector.load %arg7[%c0_60, %c0_61] : memref<128x128xi32, #tpu.memory_space<vmem>>, vector<128x128xi32>
    %c0_62 = arith.constant 0 : index
    %c0_63 = arith.constant 0 : index
    %427 = vector.load %arg3[%c0_62, %c0_63] : memref<1x128xi32, #tpu.memory_space<vmem>>, vector<1x128xi32>
    %428 = vector.broadcast %427 : vector<1x128xi32> to vector<128x128xi32>
    %429 = arith.cmpi eq, %426, %428 : vector<128x128xi32>
    %430 = arith.extui %429 : vector<128x128xi1> to vector<128x128xi32>
    %431 = arith.sitofp %430 : vector<128x128xi32> to vector<128x128xf32>
    %432 = arith.truncf %431 : vector<128x128xf32> to vector<128x128xbf16>
    %433 = arith.truncf %425 : vector<8x128xf32> to vector<8x128xbf16>
    %434 = arith.extf %433 : vector<8x128xbf16> to vector<8x128xf32>
    %435 = arith.subf %425, %434 : vector<8x128xf32>
    %436 = arith.truncf %435 : vector<8x128xf32> to vector<8x128xbf16>
    %c0_64 = arith.constant 0 : index
    %c0_65 = arith.constant 0 : index
    %437 = vector.load %arg8[%c0_64, %c0_65] : memref<8x128xf32, #tpu.memory_space<vmem>>, vector<8x128xf32>
    %cst_66 = arith.constant dense<0.000000e+00> : vector<8x128xf32>
    %438 = tpu.matmul %433, %432, %cst_66 {dimension_numbers = #tpu.dot_dimension_numbers<[1], [1], [0], [0], [0, 0, 1, 0], [], []>} : vector<8x128xbf16>, vector<128x128xbf16>, vector<8x128xf32> -> vector<8x128xf32>
    %cst_67 = arith.constant dense<0.000000e+00> : vector<8x128xf32>
    %439 = tpu.matmul %436, %432, %cst_67 {dimension_numbers = #tpu.dot_dimension_numbers<[1], [1], [0], [0], [0, 0, 1, 0], [], []>} : vector<8x128xbf16>, vector<128x128xbf16>, vector<8x128xf32> -> vector<8x128xf32>
    %440 = arith.addf %438, %439 : vector<8x128xf32>
    %441 = arith.addf %437, %440 : vector<8x128xf32>
    %c0_68 = arith.constant 0 : index
    %c0_69 = arith.constant 0 : index
    %442 = vector.load %arg8[%c0_68, %c0_69] : memref<8x128xf32, #tpu.memory_space<vmem>>, vector<8x128xf32>
    tpu.vector_store %arg8[%c0_68, %c0_69], %441 {strides = array<i32>} : memref<8x128xf32, #tpu.memory_space<vmem>>, vector<8x128xf32>,
    %c0_i32_70 = arith.constant 0 : i32
    %443 = arith.cmpi eq, %arg1, %c0_i32_70 : i32
    %444 = arith.extui %443 : i1 to i32
    %c0_i32_71 = arith.constant 0 : i32
    %445 = arith.cmpi ne, %444, %c0_i32_71 : i32
    scf.if %445 {
      %c0_72 = arith.constant 0 : index
      %c0_73 = arith.constant 0 : index
      %446 = vector.load %arg8[%c0_72, %c0_73] : memref<8x128xf32, #tpu.memory_space<vmem>>, vector<8x128xf32>
      %c0_74 = arith.constant 0 : index
      %c0_75 = arith.constant 0 : index
      %c0_76 = arith.constant 0 : index
      %447 = vector.load %arg6[%c0_74, %c0_75, %c0_76] : memref<1x8x128xf32, #tpu.memory_space<vmem>>, vector<1x8x128xf32>
      %448 = vector.shape_cast %447 : vector<1x8x128xf32> to vector<8x128xf32>
      %449 = vector.shape_cast %446 : vector<8x128xf32> to vector<1x8x128xf32>
      tpu.vector_store %arg6[%c0_74, %c0_75, %c0_76], %449 {strides = array<i32>} : memref<1x8x128xf32, #tpu.memory_space<vmem>>, vector<1x8x128xf32>,
    } else {
    }
    return
  }
  func.func @transform_0(%arg0: i32, %arg1: i32) -> (i32, i32) {
    %c1_i32 = arith.constant 1 : i32
    %0 = arith.muli %arg0, %c1_i32 : i32
    %1 = arith.addi %0, %arg1 : i32
    %c0_i32 = arith.constant 0 : i32
    %c0_i32_0 = arith.constant 0 : i32
    return %c0_i32, %1 : i32, i32
  }
  func.func @transform_1(%arg0: i32, %arg1: i32) -> (i32, i32) {
    %c1_i32 = arith.constant 1 : i32
    %0 = arith.muli %arg0, %c1_i32 : i32
    %1 = arith.addi %0, %arg1 : i32
    %c0_i32 = arith.constant 0 : i32
    %c0_i32_0 = arith.constant 0 : i32
    return %c0_i32, %1 : i32, i32
  }
  func.func @transform_2(%arg0: i32, %arg1: i32) -> (i32, i32, i32) {
    %c0_i32 = arith.constant 0 : i32
    %c0_i32_0 = arith.constant 0 : i32
    %c0_i32_1 = arith.constant 0 : i32
    %c0_i32_2 = arith.constant 0 : i32
    return %c0_i32, %c0_i32_0, %c0_i32_1 : i32, i32, i32
  }
  func.func @transform_3(%arg0: i32, %arg1: i32) -> (i32, i32, i32, i32) {
    %c0_i32 = arith.constant 0 : i32
    %c0_i32_0 = arith.constant 0 : i32
    %c0_i32_1 = arith.constant 0 : i32
    %c0_i32_2 = arith.constant 0 : i32
    %c0_i32_3 = arith.constant 0 : i32
    return %c0_i32, %c0_i32_0, %c0_i32_1, %c0_i32_2 : i32, i32, i32, i32
  }
  func.func @transform_4(%arg0: i32, %arg1: i32) -> (i32, i32, i32) {
    %c0_i32 = arith.constant 0 : i32
    %c0_i32_0 = arith.constant 0 : i32
    %c0_i32_1 = arith.constant 0 : i32
    return %arg0, %c0_i32, %c0_i32_0 : i32, i32, i32
  }
}

</mosaic_0001>

<llo_original>
// kernel: tpu_custom_call.1
$region0: #{tpu_custom_call.1}
  #allocation0 [shape = 'u32[]', space=smem, size = 0x4, offset = 0x4, fixed_abs, tag = 'smem constant byte address 0x4 - core index']
  #allocation1 [shape = 'u32[72,128]{1,0:T(1,128)}', space=vmem, size = 0x9000, scoped, tag = 'internal scratch']
  #allocation2 [shape = 's32[128,128]{1,0:T(8,128)}', space=vmem, size = 0x10000, scoped, tag = 'scratch operand']
  #allocation3 [shape = 'f32[8,128]{1,0:T(8,128)}', space=vmem, size = 0x1000, scoped, tag = 'scratch operand']
  %s0 = inlined_call_operand.vmem [shape: f32[3,256], index: 0, kind: input, shape index: {}]
  %s1 = inlined_call_operand.vmem [shape: s32[1,256], index: 1, kind: input, shape index: {}]
  %s2 = inlined_call_operand.vmem [shape: f32[9,16,8], index: 2, kind: input, shape index: {}]
  %s3 = inlined_call_operand.vmem [shape: f32[9,3,16,1], index: 3, kind: input, shape index: {}]
  %s4 = inlined_call_operand.hbm [shape: f32[2,8,128], index: 4, kind: output, shape index: {}]
  %s5 = sld [smem:[#allocation0]]
  $region57: #{tpu_custom_call.1} parent=0
    _
  %s7 = ssub.s32 1, %s5
  %s8 = scalar_select 0, %s7, %s5
  $region1: #{tpu_custom_call.1} parent=0
    #allocation4 [shape = 'u8[8192]{0}', space=vmem, size = 0x2000, scoped, tag = 'output window, operand 0']
    #allocation5 [shape = 's32[2]{0}', space=sflag, size = 0x8, scoped, tag = 'scoped memory for tpu_custom_call.1']
    %9 = vsyncpa [#allocation5], 0
    %s10 = scalar_lea.sflag [#allocation5], 1
    %11 = vsyncpa %s10, 0
    loop: start=0, step=1, limit=4
    $region2: #{tpu_custom_call.1} parent=1 // loop_pre_header
      _
    $region3: #{tpu_custom_call.1} parent=1 // loop_header
      %s13 = sphi 0, %s17
      %p14 = scmp.ge.s32.totalorder %s13, 4
      %s20 = sphi 0, %s32
      %s21 = sphi 0, %s28
      %s22 = sphi 0, %s20
      %s23 = sphi 0, %s21
      %s24 = sphi 0, %s22
      %s25 = sphi 0, %s23
      %s37 = sphi 0, %s39
      %s40 = sphi 0, %s37
      %s41 = sphi 0, %s40
      %s57 = sphi 0, %s41
      %s65 = sphi 0, %s67
      %s68 = sphi 0, %s65
      %s69 = sphi 0, %s68
      %s85 = sphi 0, %s69
      %s89 = sphi 0, %s89
      %s91 = sphi 0, %s89
      %s92 = sphi 0, %s91
      %s106 = sphi 0, %s92
      %s110 = sphi 0, %s110
      %s112 = sphi 0, %s110
      %s113 = sphi 0, %s112
      %s127 = sphi 0, %s113
      %s133 = sphi 0, %s135
      %s136 = sphi 0, %s133
      %s137 = sphi 0, %s136
      %s153 = sphi 0, %s137
    $region4: #{tpu_custom_call.1} parent=1 // loop_header_branch
      %16 = sbr.rel (%p14) target = $region8
    $region5: #{tpu_custom_call.1} parent=1 // loop_body
      %s18 = ssub.s32 %s13, 1
      %s19 = ssub.s32 %s13, 2
      %s26 = sadd.s32 1, %s21
      %p27 = scmp.ge.s32.totalorder %s26, 1
      %s28 = scalar_select %p27, 0, %s26
      %s29 = sadd.s32 1, %s20
      %s30 = scalar_select %p27, %s29, %s20
      %p31 = scmp.ge.s32.totalorder %s30, 2
      %s32 = scalar_select %p31, 0, %s30
      %s33 = sadd.s32 %s20, %s21
      %s34 = sadd.s32 %s32, %s28
      %s35 = ssub.s32 %s33, %s34
      %p36 = scmp.eq.s32.totalorder %s35, 0
      %s38 = sadd.s32 %s37, 1
      %s39 = scalar_select %p36, %s37, %s38
      %p42 = pneg %p36
      %p43 = scmp.eq.s32.totalorder %s13, 1
      %p44 = por %p42, %p43
      %p45 = scmp.ne.s32.totalorder %s37, %s40
      %p46 = scmp.eq.s32.totalorder %s13, 0
      %p47 = por %p45, %p46
      %p48 = scmp.ne.s32.totalorder %s37, %s40
      %p49 = scmp.eq.s32.totalorder %s18, 1
      %p50 = por %p48, %p49
      %p51 = scmp.ne.s32.totalorder %s40, %s41
      %p52 = scmp.eq.s32.totalorder %s18, 0
      %p53 = por %p51, %p52
      %p54 = scmp.ne.s32.totalorder %s40, %s41
      %p55 = scmp.eq.s32.totalorder %s19, 1
      %p56 = por %p54, %p55
      %p58 = scmp.ne.s32.totalorder %s41, %s57
      %p59 = scmp.eq.s32.totalorder %s19, 0
      %p60 = por %p58, %p59
      %s61 = sadd.s32 %s20, %s21
      %s62 = sadd.s32 %s32, %s28
      %s63 = ssub.s32 %s61, %s62
      %p64 = scmp.eq.s32.totalorder %s63, 0
      %s66 = sadd.s32 %s65, 1
      %s67 = scalar_select %p64, %s65, %s66
      %p70 = pneg %p64
      %p71 = scmp.eq.s32.totalorder %s13, 1
      %p72 = por %p70, %p71
      %p73 = scmp.ne.s32.totalorder %s65, %s68
      %p74 = scmp.eq.s32.totalorder %s13, 0
      %p75 = por %p73, %p74
      %p76 = scmp.ne.s32.totalorder %s65, %s68
      %p77 = scmp.eq.s32.totalorder %s18, 1
      %p78 = por %p76, %p77
      %p79 = scmp.ne.s32.totalorder %s68, %s69
      %p80 = scmp.eq.s32.totalorder %s18, 0
      %p81 = por %p79, %p80
      %p82 = scmp.ne.s32.totalorder %s68, %s69
      %p83 = scmp.eq.s32.totalorder %s19, 1
      %p84 = por %p82, %p83
      %p86 = scmp.ne.s32.totalorder %s69, %s85
      %p87 = scmp.eq.s32.totalorder %s19, 0
      %p88 = por %p86, %p87
      %s90 = sadd.s32 %s89, 1
      %p93 = scmp.eq.s32.totalorder %s13, 1
      %p94 = scmp.ne.s32.totalorder %s89, %s91
      %p95 = scmp.eq.s32.totalorder %s13, 0
      %p96 = por %p94, %p95
      %p97 = scmp.ne.s32.totalorder %s89, %s91
      %p98 = scmp.eq.s32.totalorder %s18, 1
      %p99 = por %p97, %p98
      %p100 = scmp.ne.s32.totalorder %s91, %s92
      %p101 = scmp.eq.s32.totalorder %s18, 0
      %p102 = por %p100, %p101
      %p103 = scmp.ne.s32.totalorder %s91, %s92
      %p104 = scmp.eq.s32.totalorder %s19, 1
      %p105 = por %p103, %p104
      %p107 = scmp.ne.s32.totalorder %s92, %s106
      %p108 = scmp.eq.s32.totalorder %s19, 0
      %p109 = por %p107, %p108
      %s111 = sadd.s32 %s110, 1
      %p114 = scmp.eq.s32.totalorder %s13, 1
      %p115 = scmp.ne.s32.totalorder %s110, %s112
      %p116 = scmp.eq.s32.totalorder %s13, 0
      %p117 = por %p115, %p116
      %p118 = scmp.ne.s32.totalorder %s110, %s112
      %p119 = scmp.eq.s32.totalorder %s18, 1
      %p120 = por %p118, %p119
      %p121 = scmp.ne.s32.totalorder %s112, %s113
      %p122 = scmp.eq.s32.totalorder %s18, 0
      %p123 = por %p121, %p122
      %p124 = scmp.ne.s32.totalorder %s112, %s113
      %p125 = scmp.eq.s32.totalorder %s19, 1
      %p126 = por %p124, %p125
      %p128 = scmp.ne.s32.totalorder %s113, %s127
      %p129 = scmp.eq.s32.totalorder %s19, 0
      %p130 = por %p128, %p129
      %s131 = ssub.s32 %s20, %s32
      %p132 = scmp.eq.s32.totalorder %s131, 0
      %s134 = sadd.s32 %s133, 1
      %s135 = scalar_select %p132, %s133, %s134
      %p138 = pneg %p132
      %p139 = scmp.eq.s32.totalorder %s13, 1
      %p140 = por %p138, %p139
      %p141 = scmp.ne.s32.totalorder %s133, %s136
      %p142 = scmp.eq.s32.totalorder %s13, 0
      %p143 = por %p141, %p142
      %p144 = scmp.ne.s32.totalorder %s133, %s136
      %p145 = scmp.eq.s32.totalorder %s18, 1
      %p146 = por %p144, %p145
      %p147 = scmp.ne.s32.totalorder %s136, %s137
      %p148 = scmp.eq.s32.totalorder %s18, 0
      %p149 = por %p147, %p148
      %p150 = scmp.ne.s32.totalorder %s136, %s137
      %p151 = scmp.eq.s32.totalorder %s19, 1
      %p152 = por %p150, %p151
      %p154 = scmp.ne.s32.totalorder %s137, %s153
      %p155 = scmp.eq.s32.totalorder %s19, 0
      %p156 = por %p154, %p155
      %p157 = scmp.le.s32.totalorder 1, %s13
      %p158 = scmp.lt.s32.totalorder %s13, 3
      %p159 = pnand %p157, %p158
      %p160 = pneg %p159
      // Predicated region
      $region9: #{tpu_custom_call.1} parent=5 // pred_check
        _
      $region10: #{tpu_custom_call.1} parent=5 // pred_check_branch
        %162 = sbr.rel (%p159) target = $region12
      $region11: #{tpu_custom_call.1} parent=5 // pred_region
        %s163 = ssub.s32 %s13, 1
        // Predicated region
        $region13: #{tpu_custom_call.1} parent=11 // pred_check
          %p164 = pneg %p102
        $region14: #{tpu_custom_call.1} parent=11 // pred_check_branch
          %166 = sbr.rel (%p164) target = $region16
        $region15: #{tpu_custom_call.1} parent=11 // pred_region
          _
        $region16: #{tpu_custom_call.1} parent=11 // pred_fallthru
          _
        // Predicated region
        $region17: #{tpu_custom_call.1} parent=11 // pred_check
          %p167 = pneg %p123
        $region18: #{tpu_custom_call.1} parent=11 // pred_check_branch
          %169 = sbr.rel (%p167) target = $region20
        $region19: #{tpu_custom_call.1} parent=11 // pred_region
          _
        $region20: #{tpu_custom_call.1} parent=11 // pred_fallthru
          _
      $region12: #{tpu_custom_call.1} parent=5 // pred_fallthru
        _
      %p170 = scmp.lt.s32.totalorder %s13, 2
      // Predicated region
      $region21: #{tpu_custom_call.1} parent=5 // pred_check
        %p171 = pneg %p170
      $region22: #{tpu_custom_call.1} parent=5 // pred_check_branch
        %173 = sbr.rel (%p171) target = $region24
      $region23: #{tpu_custom_call.1} parent=5 // pred_region
        // Predicated region
        $region25: #{tpu_custom_call.1} parent=23 // pred_check
          %p174 = pneg %p47
        $region26: #{tpu_custom_call.1} parent=23 // pred_check_branch
          %176 = sbr.rel (%p174) target = $region28
        $region27: #{tpu_custom_call.1} parent=23 // pred_region
          %s177 = sadd.s32 %s20, %s21
          %p178 = scmp.lt.s32.totalorder %s177, 1
          %s179 = scalar_select %p178, %s177, 1
          %s180 = smul.addr %s179, 4
          %s181 = scalar_lea.vmem %s0, %s180
          %s182 = sadd.s32 %s20, %s21
        $region28: #{tpu_custom_call.1} parent=23 // pred_fallthru
          _
        // Predicated region
        $region29: #{tpu_custom_call.1} parent=23 // pred_check
          %p183 = pneg %p75
        $region30: #{tpu_custom_call.1} parent=23 // pred_check_branch
          %185 = sbr.rel (%p183) target = $region32
        $region31: #{tpu_custom_call.1} parent=23 // pred_region
          %s186 = sadd.s32 %s20, %s21
          %p187 = scmp.lt.s32.totalorder %s186, 1
          %s188 = scalar_select %p187, %s186, 1
          %s189 = scalar_lea.vmem %s1, %s188
          %s190 = sadd.s32 %s20, %s21
        $region32: #{tpu_custom_call.1} parent=23 // pred_fallthru
          _
      $region24: #{tpu_custom_call.1} parent=5 // pred_fallthru
        _
      %p191 = scmp.le.s32.totalorder 1, %s13
      %p192 = scmp.lt.s32.totalorder %s13, 3
      %p193 = pnand %p191, %p192
      %p194 = pneg %p193
      // Predicated region
      $region33: #{tpu_custom_call.1} parent=5 // pred_check
        _
      $region34: #{tpu_custom_call.1} parent=5 // pred_check_branch
        %196 = sbr.rel (%p193) target = $region36
      $region35: #{tpu_custom_call.1} parent=5 // pred_region
        %s197 = ssub.s32 %s13, 1
        %s198 = sadd.s32 %s22, %s23
        %p199 = scmp.lt.s32.totalorder %s198, 1
        %s200 = scalar_select %p199, %s198, 1
        %s201 = smul.addr %s200, 4
        %s202 = scalar_lea.vmem %s0, %s201
        %p203 = pneg %p53
        %p204 = pneg %p50
        %s205 = sadd.s32 %s22, %s23
        %p206 = scmp.lt.s32.totalorder %s205, 1
        %s207 = scalar_select %p206, %s205, 1
        %s208 = scalar_lea.vmem %s1, %s207
        %p209 = pneg %p81
        %p210 = pneg %p78
        %p211 = pneg %p102
        %p212 = pneg %p99
        %p213 = pneg %p123
        %p214 = pneg %p120
        %p215 = pneg %p149
        %p216 = pneg %p146
        %s217 = sand.u32 %s136, 1
        %s218 = scalar_lea.sflag [#allocation5], %s217
        %s219 = sand.u32 %s136, 1
        %s220 = smul.addr %s219, 8
        %s221 = scalar_lea.vmem [#allocation4], %s220
        %s222 = sadd.s32 %s22, %s23
        %p223 = scmp.lt.s32.totalorder %s222, 1
        %s224 = scalar_select %p223, %s222, 1
        %s225 = smul.addr %s224, 4
        %s226 = scalar_lea.vmem %s0, %s225
        %s227 = sadd.s32 %s22, %s23
        %s228 = sadd.s32 %s22, %s23
        %p229 = scmp.lt.s32.totalorder %s228, 1
        %s230 = scalar_select %p229, %s228, 1
        %s231 = scalar_lea.vmem %s1, %s230
        %s232 = sadd.s32 %s22, %s23
        %p233 = scmp.eq.s32.totalorder %s23, 0
        // Predicated region
        $region37: #{tpu_custom_call.1} parent=35 // pred_check
          %p234 = pneg %p233
        $region38: #{tpu_custom_call.1} parent=35 // pred_check_branch
          %236 = sbr.rel (%p234) target = $region40
        $region39: #{tpu_custom_call.1} parent=35 // pred_region
          %237 = vst [vmem:[#allocation3] sm:$0xff] 0.0
          %v238 = vlaneseq
          %v239 = vshrl.u32 %v238, 7
          %v240 = vadd.s32 %v239, 8
          %v241 = vadd.s32 %v239, 16
          %v242 = vadd.s32 %v239, 24
          %v243 = vadd.s32 %v239, 32
          %v244 = vadd.s32 %v239, 40
          %v245 = vadd.s32 %v239, 48
          %v246 = vadd.s32 %v239, 56
          %v247 = vadd.s32 %v239, 64
          %v248 = vadd.s32 %v239, 72
          %v249 = vadd.s32 %v239, 80
          %v250 = vadd.s32 %v239, 88
          %v251 = vadd.s32 %v239, 96
          %v252 = vadd.s32 %v239, 104
          %v253 = vadd.s32 %v239, 112
          %v254 = vadd.s32 %v239, 120
          %255 = vst [vmem:[#allocation2] sm:$0xff] %v239
          %256 = vst [vmem:[#allocation2 + $0x8] sm:$0xff] %v240
          %257 = vst [vmem:[#allocation2 + $0x10] sm:$0xff] %v241
          %258 = vst [vmem:[#allocation2 + $0x18] sm:$0xff] %v242
          %259 = vst [vmem:[#allocation2 + $0x20] sm:$0xff] %v243
          %260 = vst [vmem:[#allocation2 + $0x28] sm:$0xff] %v244
          %261 = vst [vmem:[#allocation2 + $0x30] sm:$0xff] %v245
          %262 = vst [vmem:[#allocation2 + $0x38] sm:$0xff] %v246
          %263 = vst [vmem:[#allocation2 + $0x40] sm:$0xff] %v247
          %264 = vst [vmem:[#allocation2 + $0x48] sm:$0xff] %v248
          %265 = vst [vmem:[#allocation2 + $0x50] sm:$0xff] %v249
          %266 = vst [vmem:[#allocation2 + $0x58] sm:$0xff] %v250
          %267 = vst [vmem:[#allocation2 + $0x60] sm:$0xff] %v251
          %268 = vst [vmem:[#allocation2 + $0x68] sm:$0xff] %v252
          %269 = vst [vmem:[#allocation2 + $0x70] sm:$0xff] %v253
          %270 = vst [vmem:[#allocation2 + $0x78] sm:$0xff] %v254
        $region40: #{tpu_custom_call.1} parent=35 // pred_fallthru
          _
        %v271 = vld [vmem:[%s2] sm:$0xff]
        %v272 = vld [vmem:[%s2 + $0x8] sm:$0xff]
        %v273 = vld [vmem:[%s2 + $0x10] sm:$0xff]
        %v274 = vld [vmem:[%s2 + $0x18] sm:$0xff]
        %v275 = vld [vmem:[%s2 + $0x20] sm:$0xff]
        %v276 = vld [vmem:[%s2 + $0x28] sm:$0xff]
        %v277 = vld [vmem:[%s2 + $0x30] sm:$0xff]
        %v278 = vld [vmem:[%s2 + $0x38] sm:$0xff]
        %v279 = vld [vmem:[%s2 + $0x40] sm:$0xff]
        %v280 = vld [vmem:[%s2 + $0x48] sm:$0xff]
        %v281 = vld [vmem:[%s3] sm:$0xff]
        %v282 = vld [vmem:[%s3 + $0x8] sm:$0xff]
        %v283 = vld [vmem:[%s3 + $0x10] sm:$0xff]
        %v284 = vld [vmem:[%s3 + $0x20] sm:$0xff]
        %v285 = vld [vmem:[%s3 + $0x30] sm:$0xff]
        %v286 = vld [vmem:[%s3 + $0x38] sm:$0xff]
        %v287 = vld [vmem:[%s3 + $0x40] sm:$0xff]
        %v288 = vld [vmem:[%s3 + $0x50] sm:$0xff]
        %v289 = vld [vmem:[%s3 + $0x60] sm:$0xff]
        %v290 = vld [vmem:[%s3 + $0x68] sm:$0xff]
        %v291 = vld [vmem:[%s3 + $0x70] sm:$0xff]
        %v292 = vld [vmem:[%s3 + $0x80] sm:$0xff]
        %v293 = vld [vmem:[%s3 + $0x90] sm:$0xff]
        %v294 = vld [vmem:[%s3 + $0x98] sm:$0xff]
        %v295 = vld [vmem:[%s3 + $0xa0] sm:$0xff]
        %v296 = vld [vmem:[%s3 + $0xb0] sm:$0xff]
        %v297 = vld [vmem:[%s3 + $0xc0] sm:$0xff]
        %v298 = vld [vmem:[%s3 + $0xc8] sm:$0xff]
        %v299 = vld [vmem:[%s3 + $0xd0] sm:$0xff]
        %v300 = vld [vmem:[%s3 + $0xe0] sm:$0xff]
        %v301 = vld [vmem:[%s226] sm:$0x7]
        %303 = vset.pattern.permute.xlu0 0
        %304 = vperm.xlu0 %303, %v281
        %v305 = vpop.permute.xlu0 %304
        %308 = vset.pattern.permute.xlu0 0
        %309 = vperm.xlu0 %308, %v282
        %v310 = vpop.permute.xlu0 %309
        %vm312 = vcmask 23552
        %v314 = vsel %vm312, %v271, 0
        %v317 = vsel %vm312, %v272, 0
        %vm319 = vcmask 1042432
        %v321 = vsel %vm319, %v301, 0
        %323 = vmatpush.msra.mxu0 0.0
        %324 = vmatpush.msra.mxu0 0.0
        %325 = vmatpush.msra.mxu0 0.0
        %326 = vmatpush.msra.mxu0 0.0
        %327 = vmatpush.msra.mxu0 0.0
        %328 = vmatpush.msra.mxu0 0.0
        %329 = vmatpush.msra.mxu0 0.0
        %330 = vmatpush.msra.mxu0 0.0
        %331 = vmatpush.msra.mxu0 0.0
        %332 = vmatpush.msra.mxu0 0.0
        %333 = vmatpush.msra.mxu0 0.0
        %334 = vmatpush.msra.mxu0 0.0
        %335 = vmatpush.msra.mxu0 0.0
        %336 = vmatpush.msra.mxu0 0.0
        %337 = vmatpush.msra.mxu0 0.0
        %338 = vmatpush.msra.mxu0 %v321
        %339 = vmatmul.f32.gmra.mxu0 %v314
        %v340 = vpop.f32.mrf.mxu0
        %v341 = vadd.f32 %v305, %v340
        %342 = vmatmul.f32.gmra.mxu0 %v317
        %v343 = vpop.f32.mrf.mxu0
        %v344 = vadd.f32 %v310, %v343
        %345 = vdwg.mxu0
        %v346 = vperm.slane %v344, 0
        %v347 = vsub.f32 %v341, %v346
        %v348 = vmul.f32 %v347, %v347
        %v349 = vrot.slane %v348, 4
        %v350 = vadd.f32 %v348, %v349
        %v351 = vrot.slane %v350, 2
        %v352 = vadd.f32 %v350, %v351
        %v353 = vrot.slane %v352, 1
        %v354 = vadd.f32 %v352, %v353
        %v355 = vrcp.pop 8.0
        %v356 = vmul.f32 8.0, %v355
        %v357 = vsub.f32 1.0, %v356
        %v358 = vmul.f32 %v355, %v357
        %v359 = vadd.f32 %v355, %v358
        %vm360 = vweird.f32 %v355
        %v361 = vsel %vm360, %v355, %v359
        %v362 = vmul.f32 %v354, %v361
        %v363 = vadd.f32 %v362, 1e-05
        %v364 = vrsqrt.pop %v363
        %v365 = vmul.f32 %v364, %v363
        %v366 = vmul.f32 %v365, %v364
        %v367 = vmul.f32 0.5, %v366
        %v368 = vsub.f32 1.5, %v367
        %v369 = vmul.f32 %v364, %v368
        %vm370 = vweird.f32 %v363
        %vm371 = vweird.f32 %v364
        %vm372 = vmor %vm370, %vm371
        %v373 = vsel %vm372, %v364, %v369
        %v374 = vmul.f32 %v347, %v373
        %376 = vset.pattern.permute.xlu0 0
        %377 = vperm.xlu0 %376, %v283
        %v378 = vpop.permute.xlu0 %377
        %v380 = vmul.f32 %v374, %v378
        %382 = vset.pattern.permute.xlu0 0
        %383 = vperm.xlu0 %382, %v284
        %v384 = vpop.permute.xlu0 %383
        %v386 = vadd.f32 %v380, %v384
        %v387 = vtanh.pop %v386
        %389 = vset.pattern.permute.xlu0 0
        %390 = vperm.xlu0 %389, %v285
        %v391 = vpop.permute.xlu0 %390
        %394 = vset.pattern.permute.xlu0 0
        %395 = vperm.xlu0 %394, %v286
        %v396 = vpop.permute.xlu0 %395
        %vm398 = vcmask 64512
        %v400 = vsel %vm398, %v273, 0
        %v403 = vsel %vm398, %v274, 0
        %405 = vmatpush.msra.mxu0 0.0
        %406 = vmatpush.msra.mxu0 0.0
        %407 = vmatpush.msra.mxu0 0.0
        %408 = vmatpush.msra.mxu0 0.0
        %409 = vmatpush.msra.mxu0 0.0
        %410 = vmatpush.msra.mxu0 0.0
        %411 = vmatpush.msra.mxu0 0.0
        %412 = vmatpush.msra.mxu0 0.0
        %413 = vmatpush.msra.mxu0 0.0
        %414 = vmatpush.msra.mxu0 0.0
        %415 = vmatpush.msra.mxu0 0.0
        %416 = vmatpush.msra.mxu0 0.0
        %417 = vmatpush.msra.mxu0 0.0
        %418 = vmatpush.msra.mxu0 0.0
        %419 = vmatpush.msra.mxu0 0.0
        %420 = vmatpush.msra.mxu0 %v387
        %421 = vmatmul.f32.gmra.mxu0 %v400
        %v422 = vpop.f32.mrf.mxu0
        %v423 = vadd.f32 %v391, %v422
        %424 = vmatmul.f32.gmra.mxu0 %v403
        %v425 = vpop.f32.mrf.mxu0
        %v426 = vadd.f32 %v396, %v425
        %427 = vdwg.mxu0
        %v428 = vperm.slane %v426, 0
        %v429 = vsub.f32 %v423, %v428
        %v430 = vmul.f32 %v429, %v429
        %v431 = vrot.slane %v430, 4
        %v432 = vadd.f32 %v430, %v431
        %v433 = vrot.slane %v432, 2
        %v434 = vadd.f32 %v432, %v433
        %v435 = vrot.slane %v434, 1
        %v436 = vadd.f32 %v434, %v435
        %v437 = vmul.f32 %v436, %v361
        %v438 = vadd.f32 %v437, 1e-05
        %v439 = vrsqrt.pop %v438
        %v440 = vmul.f32 %v439, %v438
        %v441 = vmul.f32 %v440, %v439
        %v442 = vmul.f32 0.5, %v441
        %v443 = vsub.f32 1.5, %v442
        %v444 = vmul.f32 %v439, %v443
        %vm445 = vweird.f32 %v438
        %vm446 = vweird.f32 %v439
        %vm447 = vmor %vm445, %vm446
        %v448 = vsel %vm447, %v439, %v444
        %v449 = vmul.f32 %v429, %v448
        %451 = vset.pattern.permute.xlu0 0
        %452 = vperm.xlu0 %451, %v287
        %v453 = vpop.permute.xlu0 %452
        %v455 = vmul.f32 %v449, %v453
        %457 = vset.pattern.permute.xlu0 0
        %458 = vperm.xlu0 %457, %v288
        %v459 = vpop.permute.xlu0 %458
        %v461 = vadd.f32 %v455, %v459
        %v462 = vtanh.pop %v461
        %464 = vset.pattern.permute.xlu0 0
        %465 = vperm.xlu0 %464, %v289
        %v466 = vpop.permute.xlu0 %465
        %469 = vset.pattern.permute.xlu0 0
        %470 = vperm.xlu0 %469, %v290
        %v471 = vpop.permute.xlu0 %470
        %v474 = vsel %vm398, %v275, 0
        %v477 = vsel %vm398, %v276, 0
        %479 = vmatpush.msra.mxu0 0.0
        %480 = vmatpush.msra.mxu0 0.0
        %481 = vmatpush.msra.mxu0 0.0
        %482 = vmatpush.msra.mxu0 0.0
        %483 = vmatpush.msra.mxu0 0.0
        %484 = vmatpush.msra.mxu0 0.0
        %485 = vmatpush.msra.mxu0 0.0
        %486 = vmatpush.msra.mxu0 0.0
        %487 = vmatpush.msra.mxu0 0.0
        %488 = vmatpush.msra.mxu0 0.0
        %489 = vmatpush.msra.mxu0 0.0
        %490 = vmatpush.msra.mxu0 0.0
        %491 = vmatpush.msra.mxu0 0.0
        %492 = vmatpush.msra.mxu0 0.0
        %493 = vmatpush.msra.mxu0 0.0
        %494 = vmatpush.msra.mxu0 %v462
        %495 = vmatmul.f32.gmra.mxu0 %v474
        %v496 = vpop.f32.mrf.mxu0
        %v497 = vadd.f32 %v466, %v496
        %498 = vmatmul.f32.gmra.mxu0 %v477
        %v499 = vpop.f32.mrf.mxu0
        %v500 = vadd.f32 %v471, %v499
        %501 = vdwg.mxu0
        %v502 = vperm.slane %v500, 0
        %v503 = vsub.f32 %v497, %v502
        %v504 = vmul.f32 %v503, %v503
        %v505 = vrot.slane %v504, 4
        %v506 = vadd.f32 %v504, %v505
        %v507 = vrot.slane %v506, 2
        %v508 = vadd.f32 %v506, %v507
        %v509 = vrot.slane %v508, 1
        %v510 = vadd.f32 %v508, %v509
        %v511 = vmul.f32 %v510, %v361
        %v512 = vadd.f32 %v511, 1e-05
        %v513 = vrsqrt.pop %v512
        %v514 = vmul.f32 %v513, %v512
        %v515 = vmul.f32 %v514, %v513
        %v516 = vmul.f32 0.5, %v515
        %v517 = vsub.f32 1.5, %v516
        %v518 = vmul.f32 %v513, %v517
        %vm519 = vweird.f32 %v512
        %vm520 = vweird.f32 %v513
        %vm521 = vmor %vm519, %vm520
        %v522 = vsel %vm521, %v513, %v518
        %v523 = vmul.f32 %v503, %v522
        %525 = vset.pattern.permute.xlu0 0
        %526 = vperm.xlu0 %525, %v291
        %v527 = vpop.permute.xlu0 %526
        %v529 = vmul.f32 %v523, %v527
        %531 = vset.pattern.permute.xlu0 0
        %532 = vperm.xlu0 %531, %v292
        %v533 = vpop.permute.xlu0 %532
        %v535 = vadd.f32 %v529, %v533
        %v536 = vtanh.pop %v535
        %538 = vset.pattern.permute.xlu0 0
        %539 = vperm.xlu0 %538, %v293
        %v540 = vpop.permute.xlu0 %539
        %543 = vset.pattern.permute.xlu0 0
        %544 = vperm.xlu0 %543, %v294
        %v545 = vpop.permute.xlu0 %544
        %v548 = vsel %vm398, %v277, 0
        %v551 = vsel %vm398, %v278, 0
        %553 = vmatpush.msra.mxu0 0.0
        %554 = vmatpush.msra.mxu0 0.0
        %555 = vmatpush.msra.mxu0 0.0
        %556 = vmatpush.msra.mxu0 0.0
        %557 = vmatpush.msra.mxu0 0.0
        %558 = vmatpush.msra.mxu0 0.0
        %559 = vmatpush.msra.mxu0 0.0
        %560 = vmatpush.msra.mxu0 0.0
        %561 = vmatpush.msra.mxu0 0.0
        %562 = vmatpush.msra.mxu0 0.0
        %563 = vmatpush.msra.mxu0 0.0
        %564 = vmatpush.msra.mxu0 0.0
        %565 = vmatpush.msra.mxu0 0.0
        %566 = vmatpush.msra.mxu0 0.0
        %567 = vmatpush.msra.mxu0 0.0
        %568 = vmatpush.msra.mxu0 %v536
        %569 = vmatmul.f32.gmra.mxu0 %v548
        %v570 = vpop.f32.mrf.mxu0
        %v571 = vadd.f32 %v540, %v570
        %572 = vmatmul.f32.gmra.mxu0 %v551
        %v573 = vpop.f32.mrf.mxu0
        %v574 = vadd.f32 %v545, %v573
        %575 = vdwg.mxu0
        %v576 = vperm.slane %v574, 0
        %v577 = vsub.f32 %v571, %v576
        %v578 = vmul.f32 %v577, %v577
        %v579 = vrot.slane %v578, 4
        %v580 = vadd.f32 %v578, %v579
        %v581 = vrot.slane %v580, 2
        %v582 = vadd.f32 %v580, %v581
        %v583 = vrot.slane %v582, 1
        %v584 = vadd.f32 %v582, %v583
        %v585 = vmul.f32 %v584, %v361
        %v586 = vadd.f32 %v585, 1e-05
        %v587 = vrsqrt.pop %v586
        %v588 = vmul.f32 %v587, %v586
        %v589 = vmul.f32 %v588, %v587
        %v590 = vmul.f32 0.5, %v589
        %v591 = vsub.f32 1.5, %v590
        %v592 = vmul.f32 %v587, %v591
        %vm593 = vweird.f32 %v586
        %vm594 = vweird.f32 %v587
        %vm595 = vmor %vm593, %vm594
        %v596 = vsel %vm595, %v587, %v592
        %v597 = vmul.f32 %v577, %v596
        %599 = vset.pattern.permute.xlu0 0
        %600 = vperm.xlu0 %599, %v295
        %v601 = vpop.permute.xlu0 %600
        %v603 = vmul.f32 %v597, %v601
        %605 = vset.pattern.permute.xlu0 0
        %606 = vperm.xlu0 %605, %v296
        %v607 = vpop.permute.xlu0 %606
        %v609 = vadd.f32 %v603, %v607
        %v610 = vtanh.pop %v609
        %612 = vset.pattern.permute.xlu0 0
        %613 = vperm.xlu0 %612, %v297
        %v614 = vpop.permute.xlu0 %613
        %617 = vset.pattern.permute.xlu0 0
        %618 = vperm.xlu0 %617, %v298
        %v619 = vpop.permute.xlu0 %618
        %v622 = vsel %vm398, %v279, 0
        %v625 = vsel %vm398, %v280, 0
        %627 = vmatpush.msra.mxu0 0.0
        %628 = vmatpush.msra.mxu0 0.0
        %629 = vmatpush.msra.mxu0 0.0
        %630 = vmatpush.msra.mxu0 0.0
        %631 = vmatpush.msra.mxu0 0.0
        %632 = vmatpush.msra.mxu0 0.0
        %633 = vmatpush.msra.mxu0 0.0
        %634 = vmatpush.msra.mxu0 0.0
        %635 = vmatpush.msra.mxu0 0.0
        %636 = vmatpush.msra.mxu0 0.0
        %637 = vmatpush.msra.mxu0 0.0
        %638 = vmatpush.msra.mxu0 0.0
        %639 = vmatpush.msra.mxu0 0.0
        %640 = vmatpush.msra.mxu0 0.0
        %641 = vmatpush.msra.mxu0 0.0
        %642 = vmatpush.msra.mxu0 %v610
        %643 = vmatmul.f32.gmra.mxu0 %v622
        %v644 = vpop.f32.mrf.mxu0
        %v645 = vadd.f32 %v614, %v644
        %646 = vmatmul.f32.gmra.mxu0 %v625
        %v647 = vpop.f32.mrf.mxu0
        %v648 = vadd.f32 %v619, %v647
        %649 = vdwg.mxu0
        %v650 = vperm.slane %v648, 0
        %v651 = vsub.f32 %v645, %v650
        %v652 = vmul.f32 %v651, %v651
        %v653 = vrot.slane %v652, 4
        %v654 = vadd.f32 %v652, %v653
        %v655 = vrot.slane %v654, 2
        %v656 = vadd.f32 %v654, %v655
        %v657 = vrot.slane %v656, 1
        %v658 = vadd.f32 %v656, %v657
        %v659 = vmul.f32 %v658, %v361
        %v660 = vadd.f32 %v659, 1e-05
        %v661 = vrsqrt.pop %v660
        %v662 = vmul.f32 %v661, %v660
        %v663 = vmul.f32 %v662, %v661
        %v664 = vmul.f32 0.5, %v663
        %v665 = vsub.f32 1.5, %v664
        %v666 = vmul.f32 %v661, %v665
        %vm667 = vweird.f32 %v660
        %vm668 = vweird.f32 %v661
        %vm669 = vmor %vm667, %vm668
        %v670 = vsel %vm669, %v661, %v666
        %v671 = vmul.f32 %v651, %v670
        %673 = vset.pattern.permute.xlu0 0
        %674 = vperm.xlu0 %673, %v299
        %v675 = vpop.permute.xlu0 %674
        %v677 = vmul.f32 %v671, %v675
        %679 = vset.pattern.permute.xlu0 0
        %680 = vperm.xlu0 %679, %v300
        %v681 = vpop.permute.xlu0 %680
        %v683 = vadd.f32 %v677, %v681
        %v684 = vtanh.pop %v683
        %v685 = vadd.f32 %v684, %v387
        %686 = vmatpush.msra.mxu0 0.0
        %687 = vmatpush.msra.mxu0 0.0
        %688 = vmatpush.msra.mxu0 0.0
        %689 = vmatpush.msra.mxu0 0.0
        %690 = vmatpush.msra.mxu0 0.0
        %691 = vmatpush.msra.mxu0 0.0
        %692 = vmatpush.msra.mxu0 0.0
        %693 = vmatpush.msra.mxu0 0.0
        %694 = vmatpush.msra.mxu0 0.0
        %695 = vmatpush.msra.mxu0 0.0
        %696 = vmatpush.msra.mxu0 0.0
        %697 = vmatpush.msra.mxu0 0.0
        %698 = vmatpush.msra.mxu0 0.0
        %699 = vmatpush.msra.mxu0 0.0
        %700 = vmatpush.msra.mxu0 0.0
        %701 = vmatpush.msra.mxu0 %v685
        %702 = vmatmul.f32.gmra.mxu0 %v400
        %v703 = vpop.f32.mrf.mxu0
        %v704 = vadd.f32 %v391, %v703
        %705 = vmatmul.f32.gmra.mxu0 %v403
        %v706 = vpop.f32.mrf.mxu0
        %v707 = vadd.f32 %v396, %v706
        %708 = vdwg.mxu0
        %v709 = vperm.slane %v707, 0
        %v710 = vsub.f32 %v704, %v709
        %v711 = vmul.f32 %v710, %v710
        %v712 = vrot.slane %v711, 4
        %v713 = vadd.f32 %v711, %v712
        %v714 = vrot.slane %v713, 2
        %v715 = vadd.f32 %v713, %v714
        %v716 = vrot.slane %v715, 1
        %v717 = vadd.f32 %v715, %v716
        %v718 = vmul.f32 %v717, %v361
        %v719 = vadd.f32 %v718, 1e-05
        %v720 = vrsqrt.pop %v719
        %v721 = vmul.f32 %v720, %v719
        %v722 = vmul.f32 %v721, %v720
        %v723 = vmul.f32 0.5, %v722
        %v724 = vsub.f32 1.5, %v723
        %v725 = vmul.f32 %v720, %v724
        %vm726 = vweird.f32 %v719
        %vm727 = vweird.f32 %v720
        %vm728 = vmor %vm726, %vm727
        %v729 = vsel %vm728, %v720, %v725
        %v730 = vmul.f32 %v710, %v729
        %v731 = vmul.f32 %v730, %v453
        %v732 = vadd.f32 %v731, %v459
        %v733 = vtanh.pop %v732
        %734 = vmatpush.msra.mxu0 0.0
        %735 = vmatpush.msra.mxu0 0.0
        %736 = vmatpush.msra.mxu0 0.0
        %737 = vmatpush.msra.mxu0 0.0
        %738 = vmatpush.msra.mxu0 0.0
        %739 = vmatpush.msra.mxu0 0.0
        %740 = vmatpush.msra.mxu0 0.0
        %741 = vmatpush.msra.mxu0 0.0
        %742 = vmatpush.msra.mxu0 0.0
        %743 = vmatpush.msra.mxu0 0.0
        %744 = vmatpush.msra.mxu0 0.0
        %745 = vmatpush.msra.mxu0 0.0
        %746 = vmatpush.msra.mxu0 0.0
        %747 = vmatpush.msra.mxu0 0.0
        %748 = vmatpush.msra.mxu0 0.0
        %749 = vmatpush.msra.mxu0 %v733
        %750 = vmatmul.f32.gmra.mxu0 %v474
        %v751 = vpop.f32.mrf.mxu0
        %v752 = vadd.f32 %v466, %v751
        %753 = vmatmul.f32.gmra.mxu0 %v477
        %v754 = vpop.f32.mrf.mxu0
        %v755 = vadd.f32 %v471, %v754
        %756 = vdwg.mxu0
        %v757 = vperm.slane %v755, 0
        %v758 = vsub.f32 %v752, %v757
        %v759 = vmul.f32 %v758, %v758
        %v760 = vrot.slane %v759, 4
        %v761 = vadd.f32 %v759, %v760
        %v762 = vrot.slane %v761, 2
        %v763 = vadd.f32 %v761, %v762
        %v764 = vrot.slane %v763, 1
        %v765 = vadd.f32 %v763, %v764
        %v766 = vmul.f32 %v765, %v361
        %v767 = vadd.f32 %v766, 1e-05
        %v768 = vrsqrt.pop %v767
        %v769 = vmul.f32 %v768, %v767
        %v770 = vmul.f32 %v769, %v768
        %v771 = vmul.f32 0.5, %v770
        %v772 = vsub.f32 1.5, %v771
        %v773 = vmul.f32 %v768, %v772
        %vm774 = vweird.f32 %v767
        %vm775 = vweird.f32 %v768
        %vm776 = vmor %vm774, %vm775
        %v777 = vsel %vm776, %v768, %v773
        %v778 = vmul.f32 %v758, %v777
        %v779 = vmul.f32 %v778, %v527
        %v780 = vadd.f32 %v779, %v533
        %v781 = vtanh.pop %v780
        %782 = vmatpush.msra.mxu0 0.0
        %783 = vmatpush.msra.mxu0 0.0
        %784 = vmatpush.msra.mxu0 0.0
        %785 = vmatpush.msra.mxu0 0.0
        %786 = vmatpush.msra.mxu0 0.0
        %787 = vmatpush.msra.mxu0 0.0
        %788 = vmatpush.msra.mxu0 0.0
        %789 = vmatpush.msra.mxu0 0.0
        %790 = vmatpush.msra.mxu0 0.0
        %791 = vmatpush.msra.mxu0 0.0
        %792 = vmatpush.msra.mxu0 0.0
        %793 = vmatpush.msra.mxu0 0.0
        %794 = vmatpush.msra.mxu0 0.0
        %795 = vmatpush.msra.mxu0 0.0
        %796 = vmatpush.msra.mxu0 0.0
        %797 = vmatpush.msra.mxu0 %v781
        %798 = vmatmul.f32.gmra.mxu0 %v548
        %v799 = vpop.f32.mrf.mxu0
        %v800 = vadd.f32 %v540, %v799
        %801 = vmatmul.f32.gmra.mxu0 %v551
        %v802 = vpop.f32.mrf.mxu0
        %v803 = vadd.f32 %v545, %v802
        %804 = vdwg.mxu0
        %v805 = vperm.slane %v803, 0
        %v806 = vsub.f32 %v800, %v805
        %v807 = vmul.f32 %v806, %v806
        %v808 = vrot.slane %v807, 4
        %v809 = vadd.f32 %v807, %v808
        %v810 = vrot.slane %v809, 2
        %v811 = vadd.f32 %v809, %v810
        %v812 = vrot.slane %v811, 1
        %v813 = vadd.f32 %v811, %v812
        %v814 = vmul.f32 %v813, %v361
        %v815 = vadd.f32 %v814, 1e-05
        %v816 = vrsqrt.pop %v815
        %v817 = vmul.f32 %v816, %v815
        %v818 = vmul.f32 %v817, %v816
        %v819 = vmul.f32 0.5, %v818
        %v820 = vsub.f32 1.5, %v819
        %v821 = vmul.f32 %v816, %v820
        %vm822 = vweird.f32 %v815
        %vm823 = vweird.f32 %v816
        %vm824 = vmor %vm822, %vm823
        %v825 = vsel %vm824, %v816, %v821
        %v826 = vmul.f32 %v806, %v825
        %v827 = vmul.f32 %v826, %v601
        %v828 = vadd.f32 %v827, %v607
        %v829 = vtanh.pop %v828
        %830 = vmatpush.msra.mxu0 0.0
        %831 = vmatpush.msra.mxu0 0.0
        %832 = vmatpush.msra.mxu0 0.0
        %833 = vmatpush.msra.mxu0 0.0
        %834 = vmatpush.msra.mxu0 0.0
        %835 = vmatpush.msra.mxu0 0.0
        %836 = vmatpush.msra.mxu0 0.0
        %837 = vmatpush.msra.mxu0 0.0
        %838 = vmatpush.msra.mxu0 0.0
        %839 = vmatpush.msra.mxu0 0.0
        %840 = vmatpush.msra.mxu0 0.0
        %841 = vmatpush.msra.mxu0 0.0
        %842 = vmatpush.msra.mxu0 0.0
        %843 = vmatpush.msra.mxu0 0.0
        %844 = vmatpush.msra.mxu0 0.0
        %845 = vmatpush.msra.mxu0 %v829
        %846 = vmatmul.f32.gmra.mxu0 %v622
        %v847 = vpop.f32.mrf.mxu0
        %v848 = vadd.f32 %v614, %v847
        %849 = vmatmul.f32.gmra.mxu0 %v625
        %v850 = vpop.f32.mrf.mxu0
        %v851 = vadd.f32 %v619, %v850
        %852 = vdwg.mxu0
        %v853 = vperm.slane %v851, 0
        %v854 = vsub.f32 %v848, %v853
        %v855 = vmul.f32 %v854, %v854
        %v856 = vrot.slane %v855, 4
        %v857 = vadd.f32 %v855, %v856
        %v858 = vrot.slane %v857, 2
        %v859 = vadd.f32 %v857, %v858
        %v860 = vrot.slane %v859, 1
        %v861 = vadd.f32 %v859, %v860
        %v862 = vmul.f32 %v861, %v361
        %v863 = vadd.f32 %v862, 1e-05
        %v864 = vrsqrt.pop %v863
        %v865 = vmul.f32 %v864, %v863
        %v866 = vmul.f32 %v865, %v864
        %v867 = vmul.f32 0.5, %v866
        %v868 = vsub.f32 1.5, %v867
        %v869 = vmul.f32 %v864, %v868
        %vm870 = vweird.f32 %v863
        %vm871 = vweird.f32 %v864
        %vm872 = vmor %vm870, %vm871
        %v873 = vsel %vm872, %v864, %v869
        %v874 = vmul.f32 %v854, %v873
        %v875 = vmul.f32 %v874, %v675
        %v876 = vadd.f32 %v875, %v681
        %v877 = vtanh.pop %v876
        %v878 = vadd.f32 %v877, %v685
        %879 = vmatpush.msra.mxu0 0.0
        %880 = vmatpush.msra.mxu0 0.0
        %881 = vmatpush.msra.mxu0 0.0
        %882 = vmatpush.msra.mxu0 0.0
        %883 = vmatpush.msra.mxu0 0.0
        %884 = vmatpush.msra.mxu0 0.0
        %885 = vmatpush.msra.mxu0 0.0
        %886 = vmatpush.msra.mxu0 0.0
        %887 = vmatpush.msra.mxu0 0.0
        %888 = vmatpush.msra.mxu0 0.0
        %889 = vmatpush.msra.mxu0 0.0
        %890 = vmatpush.msra.mxu0 0.0
        %891 = vmatpush.msra.mxu0 0.0
        %892 = vmatpush.msra.mxu0 0.0
        %893 = vmatpush.msra.mxu0 0.0
        %894 = vmatpush.msra.mxu0 %v878
        %895 = vmatmul.f32.gmra.mxu0 %v400
        %v896 = vpop.f32.mrf.mxu0
        %v897 = vadd.f32 %v391, %v896
        %898 = vmatmul.f32.gmra.mxu0 %v403
        %v899 = vpop.f32.mrf.mxu0
        %v900 = vadd.f32 %v396, %v899
        %901 = vdwg.mxu0
        %v902 = vperm.slane %v900, 0
        %v903 = vsub.f32 %v897, %v902
        %v904 = vmul.f32 %v903, %v903
        %v905 = vrot.slane %v904, 4
        %v906 = vadd.f32 %v904, %v905
        %v907 = vrot.slane %v906, 2
        %v908 = vadd.f32 %v906, %v907
        %v909 = vrot.slane %v908, 1
        %v910 = vadd.f32 %v908, %v909
        %v911 = vmul.f32 %v910, %v361
        %v912 = vadd.f32 %v911, 1e-05
        %v913 = vrsqrt.pop %v912
        %v914 = vmul.f32 %v913, %v912
        %v915 = vmul.f32 %v914, %v913
        %v916 = vmul.f32 0.5, %v915
        %v917 = vsub.f32 1.5, %v916
        %v918 = vmul.f32 %v913, %v917
        %vm919 = vweird.f32 %v912
        %vm920 = vweird.f32 %v913
        %vm921 = vmor %vm919, %vm920
        %v922 = vsel %vm921, %v913, %v918
        %v923 = vmul.f32 %v903, %v922
        %v924 = vmul.f32 %v923, %v453
        %v925 = vadd.f32 %v924, %v459
        %v926 = vtanh.pop %v925
        %927 = vmatpush.msra.mxu0 0.0
        %928 = vmatpush.msra.mxu0 0.0
        %929 = vmatpush.msra.mxu0 0.0
        %930 = vmatpush.msra.mxu0 0.0
        %931 = vmatpush.msra.mxu0 0.0
        %932 = vmatpush.msra.mxu0 0.0
        %933 = vmatpush.msra.mxu0 0.0
        %934 = vmatpush.msra.mxu0 0.0
        %935 = vmatpush.msra.mxu0 0.0
        %936 = vmatpush.msra.mxu0 0.0
        %937 = vmatpush.msra.mxu0 0.0
        %938 = vmatpush.msra.mxu0 0.0
        %939 = vmatpush.msra.mxu0 0.0
        %940 = vmatpush.msra.mxu0 0.0
        %941 = vmatpush.msra.mxu0 0.0
        %942 = vmatpush.msra.mxu0 %v926
        %943 = vmatmul.f32.gmra.mxu0 %v474
        %v944 = vpop.f32.mrf.mxu0
        %v945 = vadd.f32 %v466, %v944
        %946 = vmatmul.f32.gmra.mxu0 %v477
        %v947 = vpop.f32.mrf.mxu0
        %v948 = vadd.f32 %v471, %v947
        %949 = vdwg.mxu0
        %v950 = vperm.slane %v948, 0
        %v951 = vsub.f32 %v945, %v950
        %v952 = vmul.f32 %v951, %v951
        %v953 = vrot.slane %v952, 4
        %v954 = vadd.f32 %v952, %v953
        %v955 = vrot.slane %v954, 2
        %v956 = vadd.f32 %v954, %v955
        %v957 = vrot.slane %v956, 1
        %v958 = vadd.f32 %v956, %v957
        %v959 = vmul.f32 %v958, %v361
        %v960 = vadd.f32 %v959, 1e-05
        %v961 = vrsqrt.pop %v960
        %v962 = vmul.f32 %v961, %v960
        %v963 = vmul.f32 %v962, %v961
        %v964 = vmul.f32 0.5, %v963
        %v965 = vsub.f32 1.5, %v964
        %v966 = vmul.f32 %v961, %v965
        %vm967 = vweird.f32 %v960
        %vm968 = vweird.f32 %v961
        %vm969 = vmor %vm967, %vm968
        %v970 = vsel %vm969, %v961, %v966
        %v971 = vmul.f32 %v951, %v970
        %v972 = vmul.f32 %v971, %v527
        %v973 = vadd.f32 %v972, %v533
        %v974 = vtanh.pop %v973
        %975 = vmatpush.msra.mxu0 0.0
        %976 = vmatpush.msra.mxu0 0.0
        %977 = vmatpush.msra.mxu0 0.0
        %978 = vmatpush.msra.mxu0 0.0
        %979 = vmatpush.msra.mxu0 0.0
        %980 = vmatpush.msra.mxu0 0.0
        %981 = vmatpush.msra.mxu0 0.0
        %982 = vmatpush.msra.mxu0 0.0
        %983 = vmatpush.msra.mxu0 0.0
        %984 = vmatpush.msra.mxu0 0.0
        %985 = vmatpush.msra.mxu0 0.0
        %986 = vmatpush.msra.mxu0 0.0
        %987 = vmatpush.msra.mxu0 0.0
        %988 = vmatpush.msra.mxu0 0.0
        %989 = vmatpush.msra.mxu0 0.0
        %990 = vmatpush.msra.mxu0 %v974
        %991 = vmatmul.f32.gmra.mxu0 %v548
        %v992 = vpop.f32.mrf.mxu0
        %v993 = vadd.f32 %v540, %v992
        %994 = vmatmul.f32.gmra.mxu0 %v551
        %v995 = vpop.f32.mrf.mxu0
        %v996 = vadd.f32 %v545, %v995
        %997 = vdwg.mxu0
        %v998 = vperm.slane %v996, 0
        %v999 = vsub.f32 %v993, %v998
        %v1000 = vmul.f32 %v999, %v999
        %v1001 = vrot.slane %v1000, 4
        %v1002 = vadd.f32 %v1000, %v1001
        %v1003 = vrot.slane %v1002, 2
        %v1004 = vadd.f32 %v1002, %v1003
        %v1005 = vrot.slane %v1004, 1
        %v1006 = vadd.f32 %v1004, %v1005
        %v1007 = vmul.f32 %v1006, %v361
        %v1008 = vadd.f32 %v1007, 1e-05
        %v1009 = vrsqrt.pop %v1008
        %v1010 = vmul.f32 %v1009, %v1008
        %v1011 = vmul.f32 %v1010, %v1009
        %v1012 = vmul.f32 0.5, %v1011
        %v1013 = vsub.f32 1.5, %v1012
        %v1014 = vmul.f32 %v1009, %v1013
        %vm1015 = vweird.f32 %v1008
        %vm1016 = vweird.f32 %v1009
        %vm1017 = vmor %vm1015, %vm1016
        %v1018 = vsel %vm1017, %v1009, %v1014
        %v1019 = vmul.f32 %v999, %v1018
        %v1020 = vmul.f32 %v1019, %v601
        %v1021 = vadd.f32 %v1020, %v607
        %v1022 = vtanh.pop %v1021
        %1023 = vmatpush.msra.mxu0 0.0
        %1024 = vmatpush.msra.mxu0 0.0
        %1025 = vmatpush.msra.mxu0 0.0
        %1026 = vmatpush.msra.mxu0 0.0
        %1027 = vmatpush.msra.mxu0 0.0
        %1028 = vmatpush.msra.mxu0 0.0
        %1029 = vmatpush.msra.mxu0 0.0
        %1030 = vmatpush.msra.mxu0 0.0
        %1031 = vmatpush.msra.mxu0 0.0
        %1032 = vmatpush.msra.mxu0 0.0
        %1033 = vmatpush.msra.mxu0 0.0
        %1034 = vmatpush.msra.mxu0 0.0
        %1035 = vmatpush.msra.mxu0 0.0
        %1036 = vmatpush.msra.mxu0 0.0
        %1037 = vmatpush.msra.mxu0 0.0
        %1038 = vmatpush.msra.mxu0 %v1022
        %1039 = vmatmul.f32.gmra.mxu0 %v622
        %v1040 = vpop.f32.mrf.mxu0
        %v1041 = vadd.f32 %v614, %v1040
        %1042 = vmatmul.f32.gmra.mxu0 %v625
        %v1043 = vpop.f32.mrf.mxu0
        %v1044 = vadd.f32 %v619, %v1043
        %1045 = vdwg.mxu0
        %v1046 = vperm.slane %v1044, 0
        %v1047 = vsub.f32 %v1041, %v1046
        %v1048 = vmul.f32 %v1047, %v1047
        %v1049 = vrot.slane %v1048, 4
        %v1050 = vadd.f32 %v1048, %v1049
        %v1051 = vrot.slane %v1050, 2
        %v1052 = vadd.f32 %v1050, %v1051
        %v1053 = vrot.slane %v1052, 1
        %v1054 = vadd.f32 %v1052, %v1053
        %v1055 = vmul.f32 %v1054, %v361
        %v1056 = vadd.f32 %v1055, 1e-05
        %v1057 = vrsqrt.pop %v1056
        %v1058 = vmul.f32 %v1057, %v1056
        %v1059 = vmul.f32 %v1058, %v1057
        %v1060 = vmul.f32 0.5, %v1059
        %v1061 = vsub.f32 1.5, %v1060
        %v1062 = vmul.f32 %v1057, %v1061
        %vm1063 = vweird.f32 %v1056
        %vm1064 = vweird.f32 %v1057
        %vm1065 = vmor %vm1063, %vm1064
        %v1066 = vsel %vm1065, %v1057, %v1062
        %v1067 = vmul.f32 %v1047, %v1066
        %v1068 = vmul.f32 %v1067, %v675
        %v1069 = vadd.f32 %v1068, %v681
        %v1070 = vtanh.pop %v1069
        %v1071 = vadd.f32 %v1070, %v878
        %v1072 = vld [vmem:[#allocation2] sm:$0xff]
        %v1073 = vld [vmem:[#allocation2 + $0x8] sm:$0xff]
        %v1074 = vld [vmem:[#allocation2 + $0x10] sm:$0xff]
        %v1075 = vld [vmem:[#allocation2 + $0x18] sm:$0xff]
        %v1076 = vld [vmem:[#allocation2 + $0x20] sm:$0xff]
        %v1077 = vld [vmem:[#allocation2 + $0x28] sm:$0xff]
        %v1078 = vld [vmem:[#allocation2 + $0x30] sm:$0xff]
        %v1079 = vld [vmem:[#allocation2 + $0x38] sm:$0xff]
        %v1080 = vld [vmem:[#allocation2 + $0x40] sm:$0xff]
        %v1081 = vld [vmem:[#allocation2 + $0x48] sm:$0xff]
        %v1082 = vld [vmem:[#allocation2 + $0x50] sm:$0xff]
        %v1083 = vld [vmem:[#allocation2 + $0x58] sm:$0xff]
        %v1084 = vld [vmem:[#allocation2 + $0x60] sm:$0xff]
        %v1085 = vld [vmem:[#allocation2 + $0x68] sm:$0xff]
        %v1086 = vld [vmem:[#allocation2 + $0x70] sm:$0xff]
        %v1087 = vld [vmem:[#allocation2 + $0x78] sm:$0xff]
        %v1088 = vld [vmem:[%s231] sm:$0x1]
        %v1089 = vperm.slane %v1088, 0
        %vm1090 = vcmp.eq.s32.totalorder %v1072, %v1089
        %vm1091 = vcmp.eq.s32.totalorder %v1073, %v1089
        %vm1092 = vcmp.eq.s32.totalorder %v1074, %v1089
        %vm1093 = vcmp.eq.s32.totalorder %v1075, %v1089
        %vm1094 = vcmp.eq.s32.totalorder %v1076, %v1089
        %vm1095 = vcmp.eq.s32.totalorder %v1077, %v1089
        %vm1096 = vcmp.eq.s32.totalorder %v1078, %v1089
        %vm1097 = vcmp.eq.s32.totalorder %v1079, %v1089
        %vm1098 = vcmp.eq.s32.totalorder %v1080, %v1089
        %vm1099 = vcmp.eq.s32.totalorder %v1081, %v1089
        %vm1100 = vcmp.eq.s32.totalorder %v1082, %v1089
        %vm1101 = vcmp.eq.s32.totalorder %v1083, %v1089
        %vm1102 = vcmp.eq.s32.totalorder %v1084, %v1089
        %vm1103 = vcmp.eq.s32.totalorder %v1085, %v1089
        %vm1104 = vcmp.eq.s32.totalorder %v1086, %v1089
        %vm1105 = vcmp.eq.s32.totalorder %v1087, %v1089
        %v1106 = vsel %vm1090, 1, 0
        %v1107 = vsel %vm1091, 1, 0
        %v1108 = vsel %vm1092, 1, 0
        %v1109 = vsel %vm1093, 1, 0
        %v1110 = vsel %vm1094, 1, 0
        %v1111 = vsel %vm1095, 1, 0
        %v1112 = vsel %vm1096, 1, 0
        %v1113 = vsel %vm1097, 1, 0
        %v1114 = vsel %vm1098, 1, 0
        %v1115 = vsel %vm1099, 1, 0
        %v1116 = vsel %vm1100, 1, 0
        %v1117 = vsel %vm1101, 1, 0
        %v1118 = vsel %vm1102, 1, 0
        %v1119 = vsel %vm1103, 1, 0
        %v1120 = vsel %vm1104, 1, 0
        %v1121 = vsel %vm1105, 1, 0
        %v1122 = vcvt.s32.f32 %v1106
        %v1123 = vcvt.s32.f32 %v1107
        %v1124 = vcvt.s32.f32 %v1108
        %v1125 = vcvt.s32.f32 %v1109
        %v1126 = vcvt.s32.f32 %v1110
        %v1127 = vcvt.s32.f32 %v1111
        %v1128 = vcvt.s32.f32 %v1112
        %v1129 = vcvt.s32.f32 %v1113
        %v1130 = vcvt.s32.f32 %v1114
        %v1131 = vcvt.s32.f32 %v1115
        %v1132 = vcvt.s32.f32 %v1116
        %v1133 = vcvt.s32.f32 %v1117
        %v1134 = vcvt.s32.f32 %v1118
        %v1135 = vcvt.s32.f32 %v1119
        %v1136 = vcvt.s32.f32 %v1120
        %v1137 = vcvt.s32.f32 %v1121
        %v1138 = vpack.c.bf16 %v1123, %v1122
        %v1139 = vpack.c.bf16 %v1125, %v1124
        %v1140 = vpack.c.bf16 %v1127, %v1126
        %v1141 = vpack.c.bf16 %v1129, %v1128
        %v1142 = vpack.c.bf16 %v1131, %v1130
        %v1143 = vpack.c.bf16 %v1133, %v1132
        %v1144 = vpack.c.bf16 %v1135, %v1134
        %v1145 = vpack.c.bf16 %v1137, %v1136
        %v1146 = vpack.c.bf16 %v1071, %v1071
        %v1147 = vunpack.c.l.bf16 %v1146
        %v1148 = vsub.f32 %v1071, %v1147
        %v1149 = vpack.c.bf16 %v1148, %v1148
        %v1150 = vld [vmem:[#allocation3] sm:$0xff]
        %1151 = vmatpush.bf16.xpose.msra.mxu0 %v1145
        %1152 = vmatpush.bf16.xpose.msra.mxu0 %v1144
        %1153 = vmatpush.bf16.xpose.msra.mxu0 %v1143
        %1154 = vmatpush.bf16.xpose.msra.mxu0 %v1142
        %1155 = vmatpush.bf16.xpose.msra.mxu0 %v1141
        %1156 = vmatpush.bf16.xpose.msra.mxu0 %v1140
        %1157 = vmatpush.bf16.xpose.msra.mxu0 %v1139
        %1158 = vmatpush.bf16.xpose.msra.mxu0 %v1138
        %1159 = vmatmul.bf16.gmra.mxu0 %v1149
        %v1160 = vpop.f32.mrf.mxu0
        %v1161 = vadd.f32 0.0, %v1160
        %v1162 = vpop.f32.mrf.mxu0
        %1163 = vdwg.mxu0
        %1164 = vmatpush.bf16.xpose.msra.mxu0 %v1145
        %1165 = vmatpush.bf16.xpose.msra.mxu0 %v1144
        %1166 = vmatpush.bf16.xpose.msra.mxu0 %v1143
        %1167 = vmatpush.bf16.xpose.msra.mxu0 %v1142
        %1168 = vmatpush.bf16.xpose.msra.mxu0 %v1141
        %1169 = vmatpush.bf16.xpose.msra.mxu0 %v1140
        %1170 = vmatpush.bf16.xpose.msra.mxu0 %v1139
        %1171 = vmatpush.bf16.xpose.msra.mxu0 %v1138
        %1172 = vmatmul.bf16.gmra.mxu0 %v1146
        %v1173 = vpop.f32.mrf.mxu0
        %v1174 = vadd.f32 %v1161, %v1173
        %v1175 = vpop.f32.mrf.mxu0
        %1176 = vdwg.mxu0
        %v1177 = vadd.f32 %v1150, %v1174
        %1178 = vst [vmem:[#allocation3] sm:$0xff] %v1177
        // Predicated region
        $region41: #{tpu_custom_call.1} parent=35 // pred_check
          %p1179 = pneg %p233
        $region42: #{tpu_custom_call.1} parent=35 // pred_check_branch
          %1181 = sbr.rel (%p1179) target = $region44
        $region43: #{tpu_custom_call.1} parent=35 // pred_region
          %v1182 = vld [vmem:[#allocation3] sm:$0xff]
          %1183 = vst [vmem:[%s221] sm:$0xff] %v1182
        $region44: #{tpu_custom_call.1} parent=35 // pred_fallthru
          _
        %s1184 = sand.u32 %s136, 1
        %s1185 = scalar_lea.sflag [#allocation5], %s1184
        %s1186 = sand.u32 %s136, 1
        %s1187 = smul.addr %s1186, 8
        %s1188 = scalar_lea.vmem [#allocation4], %s1187
        // Predicated region
        $region45: #{tpu_custom_call.1} parent=35 // pred_check
          %p1189 = pneg %p146
        $region46: #{tpu_custom_call.1} parent=35 // pred_check_branch
          %1191 = sbr.rel (%p1189) target = $region48
        $region47: #{tpu_custom_call.1} parent=35 // pred_region
          %1193 = vsyncadd %s1185, 0
          %s1194 = smul.addr %s22, 8
          %s1195 = scalar_lea.hbm %s4, %s1194
          %s1197 = sshll.u32 %s1188, 4
          %s1198 = int_to_ptr.vmem [resolvable:$true] %s1197
          %s1199 = sshll.u32 %s1195, 4
          %s1200 = int_to_ptr.hbm [resolvable:$true] %s1199
          %1202 = dma.vmem_to_hbm [thread:$0]  %s1198, 128, %s1200, %s1185
        $region48: #{tpu_custom_call.1} parent=35 // pred_fallthru
          _
      $region36: #{tpu_custom_call.1} parent=5 // pred_fallthru
        _
      %p1203 = scmp.le.s32.totalorder 2, %s13
      // Predicated region
      $region49: #{tpu_custom_call.1} parent=5 // pred_check
        %p1204 = pneg %p1203
      $region50: #{tpu_custom_call.1} parent=5 // pred_check_branch
        %1206 = sbr.rel (%p1204) target = $region52
      $region51: #{tpu_custom_call.1} parent=5 // pred_region
        %s1207 = ssub.s32 %s13, 2
        // Predicated region
        $region53: #{tpu_custom_call.1} parent=51 // pred_check
          %p1208 = pneg %p152
        $region54: #{tpu_custom_call.1} parent=51 // pred_check_branch
          %1210 = sbr.rel (%p1208) target = $region56
        $region55: #{tpu_custom_call.1} parent=51 // pred_region
          %s1211 = sand.u32 %s137, 1
          %s1212 = scalar_lea.sflag [#allocation5], %s1211
          %s1213 = sand.u32 %s137, 1
          %s1214 = smul.addr %s1213, 8
          %s1215 = scalar_lea.vmem [#allocation4], %s1214
          %1217 = dma.done %s1212, 128
        $region56: #{tpu_custom_call.1} parent=51 // pred_fallthru
          _
      $region52: #{tpu_custom_call.1} parent=5 // pred_fallthru
        _
    $region6: #{tpu_custom_call.1} parent=1 // loop_footer
      %s17 = sadd.s32 1, %s13
    $region7: #{tpu_custom_call.1} parent=1 // loop_footer_branch
      %12 = sbr.rel target = $region3
    $region8: #{tpu_custom_call.1} parent=1 // loop_exit
      _
    %1218 = vsyncpa [#allocation5], 1
    %s1219 = scalar_lea.sflag [#allocation5], 1
    %1220 = vsyncpa %s1219, 1

</llo_original>
